<compile_context>
chip_gen: v7x
topology: tpu7x:2x2x1
jax: 0.10.0
libtpu: 0.0.40
codegen_flags: <defaults>
</compile_context>

<pallas_src>
import numpy as np
import jax
import jax.numpy as jnp
from jax.experimental import pallas as pl
from jax.experimental.pallas import tpu as pltpu

GEM_P = 3.0
GEM_EPS = 1e-6


def _align(n, a):
    return ((n + a - 1) // a) * a


# ---------------------------------------------------------------------------
# Fused Pallas kernel: all stages + projections + depth-max + residual + mean,
# batched over the whole per-grid-step batch block.
# ---------------------------------------------------------------------------
def _make_kernel(layout, mean_row, bb, k, g, c_last):
    pad = k // 2

    def kernel(x_ref, w_ref, s_ref, out_ref):
        # x_ref: (bb, L0, c_in0) f32, w_ref: packed bf16 weight slab,
        # s_ref: packed f32 bias/pool slab, out_ref: (bb, c_last) f32.

        def conv(a3, w_row, w_rows, c_out, bias):
            """Replicate-padded k-tap conv over the whole batch block as ONE
            bf16 MXU matmul: (bb*L, k*C) @ (k*C, C_out) with f32 accumulation."""
            L, c = a3.shape[1], a3.shape[2]
            apad = jnp.concatenate([a3[:, :1]] * pad + [a3] + [a3[:, -1:]] * pad,
                                   axis=1)                          # (bb, L+2p, C)
            ak = jnp.concatenate([apad[:, d:d + L] for d in range(k)], axis=2)
            w = w_ref[w_row:w_row + w_rows, :c_out]                  # bf16 (k*C, C_out)
            y = jnp.dot(ak.reshape(bb * L, k * c).astype(jnp.bfloat16), w,
                        preferred_element_type=jnp.float32)
            return y + bias                                          # (bb*L, C_out) f32

        cur3 = x_ref[...]                                            # (bb, L, C_in) f32
        cur2 = cur3.reshape(bb * cur3.shape[1], cur3.shape[2])
        y_max = None
        for st in layout:
            c_in, c_out, L = st["c_in"], st["c_out"], st["L"]
            b3r = st["b3_row"]
            b1 = s_ref[b3r + 0:b3r + 1, :c_out]
            b2 = s_ref[b3r + 1:b3r + 2, :c_out]
            bd = s_ref[b3r + 2:b3r + 3, :c_out]

            # conv1 (+ folded BN) -> ReLU   (Dropout1d(0.0) == identity)
            h1 = jnp.maximum(conv(cur3, st["w1_row"], k * c_in, c_out, b1), 0.0)
            # conv2 (+ folded BN)
            h2 = conv(h1.reshape(bb, L, c_out), st["w2_row"], k * c_out, c_out, b2)
            # 1x1 downsample skip (bias-free conv, + folded BN), add, ReLU
            xd = jnp.dot(cur2.astype(jnp.bfloat16),
                         w_ref[st["wd_row"]:st["wd_row"] + c_in, :c_out],
                         preferred_element_type=jnp.float32) + bd
            o = jnp.maximum(h2 + xd, 0.0)                            # (bb*L, C_out) f32

            # AdaptiveGeM (kept in f32): clamp -> x^3 (VPU) -> block-diag avg-pool
            # matmul (MXU) -> cube root via exp/log on the tiny pooled tensor (EUP).
            cmin = jnp.maximum(o, GEM_EPS)
            pool = s_ref[st["p_row"]:st["p_row"] + bb * g, :bb * L]   # (bb*G, bb*L) f32
            pooled = jnp.dot(pool, cmin * cmin * cmin,
                             preferred_element_type=jnp.float32)      # (bb*G, C_out)
            xg = jnp.exp(jnp.log(pooled) * (1.0 / GEM_P))

            # intermediate projection: Linear + SiLU (divide on the EUP slot)
            yp = jnp.dot(xg.astype(jnp.bfloat16),
                         w_ref[st["wp_row"]:st["wp_row"] + c_out, :c_last],
                         preferred_element_type=jnp.float32)
            yp = yp + s_ref[st["bp_row"]:st["bp_row"] + 1, :c_last]
            y = yp * pl.reciprocal(1.0 + jnp.exp(-yp), approx=True)   # (bb*G, c_last)

            y_max = y if y_max is None else jnp.maximum(y_max, y)
            cur2 = xg                                                 # (bb*G, C_out)
            cur3 = xg.reshape(bb, g, c_out)

        v = cur2 + y_max                                              # (bb*G, c_last)
        # per-sample mean over the G pooled positions as one tiny matmul
        mm = s_ref[mean_row:mean_row + bb, :bb * g]                   # (bb, bb*G)
        out_ref[...] = jnp.dot(mm, v, preferred_element_type=jnp.float32)

    return kernel


# ---------------------------------------------------------------------------
# Host-side packing helpers
# ---------------------------------------------------------------------------
def pool_matrix(L, G):
    """PyTorch adaptive_avg_pool1d bin boundaries as a (G, L) averaging matrix."""
    P = np.zeros((G, L), np.float32)
    for i in range(G):
        s = (i * L) // G
        e = -((-(i + 1) * L) // G)        # ceil((i+1)*L/G)
        P[i, s:e] = 1.0 / (e - s)
    return P


def _block_diag(P, bb):
    g, l = P.shape
    M = np.zeros((bb * g, bb * l), np.float32)
    for b in range(bb):
        M[b * g:(b + 1) * g, b * l:(b + 1) * l] = P
    return M


def _pack_params(stage_params, pool_blks, mean_mat, k):
    """Pack every per-stage parameter into two lane-padded slabs (bf16 weights,
    f32 biases/pooling) so the kernel issues one DMA per slab instead of ~7 per
    stage. Returns static row offsets for in-kernel `ref[r0:r0+n, :c]` slicing."""
    c_last = int(stage_params[-1]["Wp"].shape[1])
    c_outs = [int(p["Wd"].shape[1]) for p in stage_params]
    w_width = max(c_outs + [c_last])
    s_width = max(c_outs + [c_last]
                  + [int(P.shape[1]) for P in pool_blks] + [int(mean_mat.shape[1])])

    layout, w_chunks, s_chunks = [], [], []
    w_off, s_off = 0, 0
    for prm, Pblk in zip(stage_params, pool_blks):
        st = {"c_in": int(prm["Wd"].shape[0]), "c_out": int(prm["Wd"].shape[1])}
        for name, key in (("W1", "w1_row"), ("W2", "w2_row"),
                          ("Wd", "wd_row"), ("Wp", "wp_row")):
            arr = np.asarray(prm[name], np.float32)
            st[key] = w_off
            w_chunks.append((w_off, arr))
            w_off = _align(w_off + arr.shape[0], 16)      # bf16 sublane packing
        for arr, key in ((np.asarray(prm["b3"], np.float32), "b3_row"),
                         (np.asarray(prm["bp"], np.float32), "bp_row"),
                         (np.asarray(Pblk, np.float32), "p_row")):
            st[key] = s_off
            s_chunks.append((s_off, arr))
            s_off = _align(s_off + arr.shape[0], 8)
        layout.append(st)

    mean_row = s_off
    s_chunks.append((s_off, np.asarray(mean_mat, np.float32)))
    s_off = _align(s_off + mean_mat.shape[0], 8)

    w_slab = np.zeros((_align(max(w_off, 16), 16), w_width), np.float32)
    for r, arr in w_chunks:
        w_slab[r:r + arr.shape[0], :arr.shape[1]] = arr
    s_slab = np.zeros((_align(max(s_off, 8), 8), s_width), np.float32)
    for r, arr in s_chunks:
        s_slab[r:r + arr.shape[0], :arr.shape[1]] = arr
    return (jnp.asarray(w_slab, jnp.bfloat16), jnp.asarray(s_slab, jnp.float32),
            layout, mean_row)


def _pick_batch_split(B, L, c_max):
    """Split the batch across grid blocks only on multi-TensorCore chips (v7x) and
    only when each core's work clearly exceeds the ~0.35 us grid-step overhead;
    v5e/v6e have a single TC so a second grid step is pure fixed overhead."""
    try:
        kind = jax.devices()[0].device_kind.lower()
    except Exception:
        kind = ""
    if ("v7" in kind and B % 2 == 0 and (B // 2) % 8 == 0
            and B * L * c_max >= (1 << 16)):
        return 2
    return 1


# ---------------------------------------------------------------------------
# Wrapper
# ---------------------------------------------------------------------------
def build_forward(stage_params, L0, c_in0, B, gem_output_size, kernel_size):
    """Packs parameters once and returns a jitted forward(x) for x: (B, L0, c_in0)."""
    G = gem_output_size
    k = kernel_size
    num_stages = len(stage_params)
    c_last = int(stage_params[-1]["Wp"].shape[1])
    c_max = max(int(p["Wd"].shape[1]) for p in stage_params)

    nb = _pick_batch_split(B, L0, max(c_in0, c_max))
    bb = B // nb

    seq_lens = [L0] + [G] * (num_stages - 1)            # conv input length per stage
    pool_blks = [_block_diag(pool_matrix(L, G), bb) for L in seq_lens]
    mean_mat = _block_diag(np.full((1, G), 1.0 / G, np.float32), bb)   # (bb, bb*G)
    w_slab, s_slab, layout, mean_row = _pack_params(stage_params, pool_blks,
                                                    mean_mat, k)
    for st, L in zip(layout, seq_lens):
        st["L"] = int(L)

    kernel = _make_kernel(layout, mean_row, bb, k, G, c_last)

    call = pl.pallas_call(
        kernel,
        grid=(nb,),
        in_specs=[pl.BlockSpec((bb, L0, c_in0), lambda i: (i, 0, 0)),
                  pl.BlockSpec(w_slab.shape, lambda i: (0, 0)),
                  pl.BlockSpec(s_slab.shape, lambda i: (0, 0))],
        out_specs=pl.BlockSpec((bb, c_last), lambda i: (i, 0)),
        out_shape=jax.ShapeDtypeStruct((B, c_last), jnp.float32),
        compiler_params=pltpu.CompilerParams(dimension_semantics=("parallel",)),
    )

    def forward(x):
        return call(x, w_slab, s_slab)

    return jax.jit(forward)


# ---------------------------------------------------------------------------
# Deterministic parameter init (inference-mode BN folded into conv weights)
# ---------------------------------------------------------------------------
def make_stage_params(key, c_in, c_out, c_last, k):
    ks = jax.random.split(key, 19)
    w1 = 0.2 * jax.random.normal(ks[0], (c_out, c_in, k), jnp.float32)   # torch layout
    b1 = 0.1 * jax.random.normal(ks[1], (c_out,), jnp.float32)
    w2 = 0.2 * jax.random.normal(ks[2], (c_out, c_out, k), jnp.float32)
    b2 = 0.1 * jax.random.normal(ks[3], (c_out,), jnp.float32)
    wd = 0.2 * jax.random.normal(ks[4], (c_out, c_in, 1), jnp.float32)
    wp = 0.2 * jax.random.normal(ks[5], (c_last, c_out), jnp.float32)    # torch Linear
    bp = 0.1 * jax.random.normal(ks[6], (c_last,), jnp.float32)

    def bn_fold(i0, c):
        gamma = 1.0 + 0.1 * jax.random.normal(ks[i0], (c,), jnp.float32)
        beta = 0.1 * jax.random.normal(ks[i0 + 1], (c,), jnp.float32)
        mean = 0.1 * jax.random.normal(ks[i0 + 2], (c,), jnp.float32)
        var = 1.0 + 0.1 * jax.random.uniform(ks[i0 + 3], (c,), jnp.float32)
        scale = gamma / jnp.sqrt(var + 1e-5)
        shift = beta - mean * scale
        return scale, shift

    sc1, sh1 = bn_fold(7, c_out)
    sc2, sh2 = bn_fold(11, c_out)
    scd, shd = bn_fold(15, c_out)

    # im2col weight layout (k*C_in, C_out): row d*C_in + c <-> torch w[o, c, d].
    W1 = jnp.transpose(w1, (2, 1, 0)).reshape(k * c_in, c_out) * sc1[None, :]
    W2 = jnp.transpose(w2, (2, 1, 0)).reshape(k * c_out, c_out) * sc2[None, :]
    Wd = jnp.transpose(wd[:, :, 0]) * scd[None, :]            # (c_in, c_out)
    b3 = jnp.stack([b1 * sc1 + sh1,                            # conv1 bias (BN folded)
                    b2 * sc2 + sh2,                            # conv2 bias (BN folded)
                    shd], axis=0)                              # downsample (bias=False): BN shift
    return dict(W1=W1, W2=W2, Wd=Wd, b3=b3,
                Wp=jnp.transpose(wp), bp=bp.reshape(1, c_last))


if __name__ == "__main__":
    key = jax.random.PRNGKey(0)
    channels = [(4, 8), (8, 16)]       # (in_channels, out_channels) per stage
    B, L = 2, 16
    gem_output_size, kernel_size = 3, 5
    c_last = channels[-1][1]

    kx, kp = jax.random.split(key)
    x = jax.random.normal(kx, (B, L, channels[0][0]), jnp.float32)   # (B, seq, C_in)

    stage_keys = jax.random.split(kp, len(channels))
    params = [make_stage_params(stage_keys[i], cin, cout, c_last, kernel_size)
              for i, (cin, cout) in enumerate(channels)]

    fwd = build_forward(params, L0=L, c_in0=channels[0][0], B=B,
                        gem_output_size=gem_output_size, kernel_size=kernel_size)
    out = jax.block_until_ready(fwd(x))
    assert out.shape == (B, c_last), out.shape
    assert bool(jnp.all(jnp.isfinite(out)))
    print("KERNEL_OK")
</pallas_src>

<mosaic_0001>
module attributes {stable_mosaic.version = 11 : i64} {
  func.func @kernel(%arg0: i32, %arg1: memref<2x16x4xf32, #tpu.memory_space<vmem>>, %arg2: memref<272x16xbf16, #tpu.memory_space<vmem>>, %arg3: memref<56x32xf32, #tpu.memory_space<vmem>>, %arg4: memref<2x16xf32, #tpu.memory_space<vmem>>) attributes {dimension_semantics = [#tpu.dimension_semantics<parallel>], iteration_bounds = array<i64: 1>, scalar_prefetch = 0 : i64, scratch_operands = 0 : i64, tpu.core_type = #tpu.core_type<tc>, window_params = [{transform_indices = @transform_0, window_bounds = array<i64: 2, 16, 4>}, {pipeline_mode = #tpu.pipeline_mode<synchronous>, transform_indices = @transform_1, window_bounds = array<i64: 272, 16>}, {pipeline_mode = #tpu.pipeline_mode<synchronous>, transform_indices = @transform_2, window_bounds = array<i64: 56, 32>}, {transform_indices = @transform_3, window_bounds = array<i64: 2, 16>}]} {
    %c0 = arith.constant 0 : index
    %c0_0 = arith.constant 0 : index
    %c0_1 = arith.constant 0 : index
    %0 = vector.load %arg1[%c0, %c0_0, %c0_1] : memref<2x16x4xf32, #tpu.memory_space<vmem>>, vector<2x16x4xf32>
    %1 = vector.shape_cast %0 : vector<2x16x4xf32> to vector<32x4xf32>
    %c0_2 = arith.constant 0 : index
    %c0_3 = arith.constant 0 : index
    %2 = vector.load %arg3[%c0_2, %c0_3] : memref<56x32xf32, #tpu.memory_space<vmem>>, vector<1x8xf32>
    %c1 = arith.constant 1 : index
    %c0_4 = arith.constant 0 : index
    %3 = vector.load %arg3[%c1, %c0_4] : memref<56x32xf32, #tpu.memory_space<vmem>>, vector<1x8xf32>
    %c2 = arith.constant 2 : index
    %c0_5 = arith.constant 0 : index
    %4 = vector.load %arg3[%c2, %c0_5] : memref<56x32xf32, #tpu.memory_space<vmem>>, vector<1x8xf32>
    %5 = vector.extract_strided_slice %0 {offsets = [0, 0, 0], sizes = [2, 1, 4], strides = [1, 1, 1]} : vector<2x16x4xf32> to vector<2x1x4xf32>
    %6 = vector.extract_strided_slice %0 {offsets = [0, 15, 0], sizes = [2, 1, 4], strides = [1, 1, 1]} : vector<2x16x4xf32> to vector<2x1x4xf32>
    %7 = tpu.concatenate %5, %5, %0, %6, %6 in 1 : vector<2x1x4xf32>, vector<2x1x4xf32>, vector<2x16x4xf32>, vector<2x1x4xf32>, vector<2x1x4xf32> -> vector<2x20x4xf32>
    %8 = vector.extract_strided_slice %7 {offsets = [0, 0, 0], sizes = [2, 16, 4], strides = [1, 1, 1]} : vector<2x20x4xf32> to vector<2x16x4xf32>
    %9 = vector.extract_strided_slice %7 {offsets = [0, 1, 0], sizes = [2, 16, 4], strides = [1, 1, 1]} : vector<2x20x4xf32> to vector<2x16x4xf32>
    %10 = vector.extract_strided_slice %7 {offsets = [0, 2, 0], sizes = [2, 16, 4], strides = [1, 1, 1]} : vector<2x20x4xf32> to vector<2x16x4xf32>
    %11 = vector.extract_strided_slice %7 {offsets = [0, 3, 0], sizes = [2, 16, 4], strides = [1, 1, 1]} : vector<2x20x4xf32> to vector<2x16x4xf32>
    %12 = vector.extract_strided_slice %7 {offsets = [0, 4, 0], sizes = [2, 16, 4], strides = [1, 1, 1]} : vector<2x20x4xf32> to vector<2x16x4xf32>
    %13 = tpu.concatenate %8, %9, %10, %11, %12 in 2 : vector<2x16x4xf32>, vector<2x16x4xf32>, vector<2x16x4xf32>, vector<2x16x4xf32>, vector<2x16x4xf32> -> vector<2x16x20xf32>
    %c0_6 = arith.constant 0 : index
    %c0_7 = arith.constant 0 : index
    %14 = vector.load %arg2[%c0_6, %c0_7] : memref<272x16xbf16, #tpu.memory_space<vmem>>, vector<20x8xbf16>
    %15 = vector.shape_cast %13 : vector<2x16x20xf32> to vector<32x20xf32>
    %16 = arith.truncf %15 : vector<32x20xf32> to vector<32x20xbf16>
    %cst = arith.constant dense<0.000000e+00> : vector<32x8xf32>
    %17 = tpu.matmul %16, %14, %cst {dimension_numbers = #tpu.dot_dimension_numbers<[1], [0], [0], [1], [0, 0, 1, 1], [], []>} : vector<32x20xbf16>, vector<20x8xbf16>, vector<32x8xf32> -> vector<32x8xf32>
    %18 = vector.broadcast %2 : vector<1x8xf32> to vector<32x8xf32>
    %19 = arith.addf %17, %18 : vector<32x8xf32>
    %cst_8 = arith.constant 0.000000e+00 : f32
    %20 = vector.broadcast %cst_8 : f32 to vector<32x8xf32>
    %21 = arith.maximumf %19, %20 : vector<32x8xf32>
    %22 = vector.shape_cast %21 : vector<32x8xf32> to vector<2x16x8xf32>
    %23 = vector.extract_strided_slice %22 {offsets = [0, 0, 0], sizes = [2, 1, 8], strides = [1, 1, 1]} : vector<2x16x8xf32> to vector<2x1x8xf32>
    %24 = vector.extract_strided_slice %22 {offsets = [0, 15, 0], sizes = [2, 1, 8], strides = [1, 1, 1]} : vector<2x16x8xf32> to vector<2x1x8xf32>
    %25 = tpu.concatenate %23, %23, %22, %24, %24 in 1 : vector<2x1x8xf32>, vector<2x1x8xf32>, vector<2x16x8xf32>, vector<2x1x8xf32>, vector<2x1x8xf32> -> vector<2x20x8xf32>
    %26 = vector.extract_strided_slice %25 {offsets = [0, 0, 0], sizes = [2, 16, 8], strides = [1, 1, 1]} : vector<2x20x8xf32> to vector<2x16x8xf32>
    %27 = vector.extract_strided_slice %25 {offsets = [0, 1, 0], sizes = [2, 16, 8], strides = [1, 1, 1]} : vector<2x20x8xf32> to vector<2x16x8xf32>
    %28 = vector.extract_strided_slice %25 {offsets = [0, 2, 0], sizes = [2, 16, 8], strides = [1, 1, 1]} : vector<2x20x8xf32> to vector<2x16x8xf32>
    %29 = vector.extract_strided_slice %25 {offsets = [0, 3, 0], sizes = [2, 16, 8], strides = [1, 1, 1]} : vector<2x20x8xf32> to vector<2x16x8xf32>
    %30 = vector.extract_strided_slice %25 {offsets = [0, 4, 0], sizes = [2, 16, 8], strides = [1, 1, 1]} : vector<2x20x8xf32> to vector<2x16x8xf32>
    %31 = tpu.concatenate %26, %27, %28, %29, %30 in 2 : vector<2x16x8xf32>, vector<2x16x8xf32>, vector<2x16x8xf32>, vector<2x16x8xf32>, vector<2x16x8xf32> -> vector<2x16x40xf32>
    %c32 = arith.constant 32 : index
    %c0_9 = arith.constant 0 : index
    %32 = vector.load %arg2[%c32, %c0_9] : memref<272x16xbf16, #tpu.memory_space<vmem>>, vector<40x8xbf16>
    %33 = vector.shape_cast %31 : vector<2x16x40xf32> to vector<32x40xf32>
    %34 = arith.truncf %33 : vector<32x40xf32> to vector<32x40xbf16>
    %cst_10 = arith.constant dense<0.000000e+00> : vector<32x8xf32>
    %35 = tpu.matmul %34, %32, %cst_10 {dimension_numbers = #tpu.dot_dimension_numbers<[1], [0], [0], [1], [0, 0, 1, 1], [], []>} : vector<32x40xbf16>, vector<40x8xbf16>, vector<32x8xf32> -> vector<32x8xf32>
    %36 = vector.broadcast %3 : vector<1x8xf32> to vector<32x8xf32>
    %37 = arith.addf %35, %36 : vector<32x8xf32>
    %38 = arith.truncf %1 : vector<32x4xf32> to vector<32x4xbf16>
    %c80 = arith.constant 80 : index
    %c0_11 = arith.constant 0 : index
    %39 = vector.load %arg2[%c80, %c0_11] : memref<272x16xbf16, #tpu.memory_space<vmem>>, vector<4x8xbf16>
    %cst_12 = arith.constant dense<0.000000e+00> : vector<32x8xf32>
    %40 = tpu.matmul %38, %39, %cst_12 {dimension_numbers = #tpu.dot_dimension_numbers<[1], [0], [0], [1], [0, 0, 1, 1], [], []>} : vector<32x4xbf16>, vector<4x8xbf16>, vector<32x8xf32> -> vector<32x8xf32>
    %41 = vector.broadcast %4 : vector<1x8xf32> to vector<32x8xf32>
    %42 = arith.addf %40, %41 : vector<32x8xf32>
    %43 = arith.addf %37, %42 : vector<32x8xf32>
    %cst_13 = arith.constant 0.000000e+00 : f32
    %44 = vector.broadcast %cst_13 : f32 to vector<32x8xf32>
    %45 = arith.maximumf %43, %44 : vector<32x8xf32>
    %cst_14 = arith.constant 9.99999997E-7 : f32
    %46 = vector.broadcast %cst_14 : f32 to vector<32x8xf32>
    %47 = arith.maximumf %45, %46 : vector<32x8xf32>
    %c16 = arith.constant 16 : index
    %c0_15 = arith.constant 0 : index
    %48 = vector.load %arg3[%c16, %c0_15] : memref<56x32xf32, #tpu.memory_space<vmem>>, vector<6x32xf32>
    %49 = arith.mulf %47, %47 : vector<32x8xf32>
    %50 = arith.mulf %49, %47 : vector<32x8xf32>
    %cst_16 = arith.constant dense<0.000000e+00> : vector<6x8xf32>
    %51 = tpu.matmul %48, %50, %cst_16 {dimension_numbers = #tpu.dot_dimension_numbers<[1], [0], [0], [1], [0, 0, 1, 1], [], []>} : vector<6x32xf32>, vector<32x8xf32>, vector<6x8xf32> -> vector<6x8xf32>
    %52 = math.log %51 : vector<6x8xf32>
    %cst_17 = arith.constant 0.333333343 : f32
    %53 = vector.broadcast %cst_17 : f32 to vector<6x8xf32>
    %54 = arith.mulf %52, %53 : vector<6x8xf32>
    %55 = math.exp %54 : vector<6x8xf32>
    %56 = arith.truncf %55 : vector<6x8xf32> to vector<6x8xbf16>
    %c96 = arith.constant 96 : index
    %c0_18 = arith.constant 0 : index
    %57 = vector.load %arg2[%c96, %c0_18] : memref<272x16xbf16, #tpu.memory_space<vmem>>, vector<8x16xbf16>
    %cst_19 = arith.constant dense<0.000000e+00> : vector<6x16xf32>
    %58 = tpu.matmul %56, %57, %cst_19 {dimension_numbers = #tpu.dot_dimension_numbers<[1], [0], [0], [1], [0, 0, 1, 1], [], []>} : vector<6x8xbf16>, vector<8x16xbf16>, vector<6x16xf32> -> vector<6x16xf32>
    %c8 = arith.constant 8 : index
    %c0_20 = arith.constant 0 : index
    %59 = vector.load %arg3[%c8, %c0_20] : memref<56x32xf32, #tpu.memory_space<vmem>>, vector<1x16xf32>
    %60 = vector.broadcast %59 : vector<1x16xf32> to vector<6x16xf32>
    %61 = arith.addf %58, %60 : vector<6x16xf32>
    %cst_21 = arith.constant 0.000000e+00 : f32
    %62 = vector.broadcast %cst_21 : f32 to vector<6x16xf32>
    %63 = arith.subf %62, %61 : vector<6x16xf32>
    %64 = math.exp %63 : vector<6x16xf32>
    %cst_22 = arith.constant 1.000000e+00 : f32
    %65 = vector.broadcast %cst_22 : f32 to vector<6x16xf32>
    %66 = arith.addf %65, %64 : vector<6x16xf32>
    %67 = tpu.reciprocal %66 {approx = true} : vector<6x16xf32> -> vector<6x16xf32>
    %68 = arith.mulf %61, %67 : vector<6x16xf32>
    %69 = vector.shape_cast %55 : vector<6x8xf32> to vector<2x3x8xf32>
    %c24 = arith.constant 24 : index
    %c0_23 = arith.constant 0 : index
    %70 = vector.load %arg3[%c24, %c0_23] : memref<56x32xf32, #tpu.memory_space<vmem>>, vector<1x16xf32>
    %c25 = arith.constant 25 : index
    %c0_24 = arith.constant 0 : index
    %71 = vector.load %arg3[%c25, %c0_24] : memref<56x32xf32, #tpu.memory_space<vmem>>, vector<1x16xf32>
    %c26 = arith.constant 26 : index
    %c0_25 = arith.constant 0 : index
    %72 = vector.load %arg3[%c26, %c0_25] : memref<56x32xf32, #tpu.memory_space<vmem>>, vector<1x16xf32>
    %73 = vector.extract_strided_slice %69 {offsets = [0, 0, 0], sizes = [2, 1, 8], strides = [1, 1, 1]} : vector<2x3x8xf32> to vector<2x1x8xf32>
    %74 = vector.extract_strided_slice %69 {offsets = [0, 2, 0], sizes = [2, 1, 8], strides = [1, 1, 1]} : vector<2x3x8xf32> to vector<2x1x8xf32>
    %75 = tpu.concatenate %73, %73, %69, %74, %74 in 1 : vector<2x1x8xf32>, vector<2x1x8xf32>, vector<2x3x8xf32>, vector<2x1x8xf32>, vector<2x1x8xf32> -> vector<2x7x8xf32>
    %76 = vector.extract_strided_slice %75 {offsets = [0, 0, 0], sizes = [2, 3, 8], strides = [1, 1, 1]} : vector<2x7x8xf32> to vector<2x3x8xf32>
    %77 = vector.extract_strided_slice %75 {offsets = [0, 1, 0], sizes = [2, 3, 8], strides = [1, 1, 1]} : vector<2x7x8xf32> to vector<2x3x8xf32>
    %78 = vector.extract_strided_slice %75 {offsets = [0, 2, 0], sizes = [2, 3, 8], strides = [1, 1, 1]} : vector<2x7x8xf32> to vector<2x3x8xf32>
    %79 = vector.extract_strided_slice %75 {offsets = [0, 3, 0], sizes = [2, 3, 8], strides = [1, 1, 1]} : vector<2x7x8xf32> to vector<2x3x8xf32>
    %80 = vector.extract_strided_slice %75 {offsets = [0, 4, 0], sizes = [2, 3, 8], strides = [1, 1, 1]} : vector<2x7x8xf32> to vector<2x3x8xf32>
    %81 = tpu.concatenate %76, %77, %78, %79, %80 in 2 : vector<2x3x8xf32>, vector<2x3x8xf32>, vector<2x3x8xf32>, vector<2x3x8xf32>, vector<2x3x8xf32> -> vector<2x3x40xf32>
    %c112 = arith.constant 112 : index
    %c0_26 = arith.constant 0 : index
    %82 = vector.load %arg2[%c112, %c0_26] : memref<272x16xbf16, #tpu.memory_space<vmem>>, vector<40x16xbf16>
    %83 = vector.shape_cast %81 : vector<2x3x40xf32> to vector<6x40xf32>
    %84 = arith.truncf %83 : vector<6x40xf32> to vector<6x40xbf16>
    %cst_27 = arith.constant dense<0.000000e+00> : vector<6x16xf32>
    %85 = tpu.matmul %84, %82, %cst_27 {dimension_numbers = #tpu.dot_dimension_numbers<[1], [0], [0], [1], [0, 0, 1, 1], [], []>} : vector<6x40xbf16>, vector<40x16xbf16>, vector<6x16xf32> -> vector<6x16xf32>
    %86 = vector.broadcast %70 : vector<1x16xf32> to vector<6x16xf32>
    %87 = arith.addf %85, %86 : vector<6x16xf32>
    %cst_28 = arith.constant 0.000000e+00 : f32
    %88 = vector.broadcast %cst_28 : f32 to vector<6x16xf32>
    %89 = arith.maximumf %87, %88 : vector<6x16xf32>
    %90 = vector.shape_cast %89 : vector<6x16xf32> to vector<2x3x16xf32>
    %91 = vector.extract_strided_slice %90 {offsets = [0, 0, 0], sizes = [2, 1, 16], strides = [1, 1, 1]} : vector<2x3x16xf32> to vector<2x1x16xf32>
    %92 = vector.extract_strided_slice %90 {offsets = [0, 2, 0], sizes = [2, 1, 16], strides = [1, 1, 1]} : vector<2x3x16xf32> to vector<2x1x16xf32>
    %93 = tpu.concatenate %91, %91, %90, %92, %92 in 1 : vector<2x1x16xf32>, vector<2x1x16xf32>, vector<2x3x16xf32>, vector<2x1x16xf32>, vector<2x1x16xf32> -> vector<2x7x16xf32>
    %94 = vector.extract_strided_slice %93 {offsets = [0, 0, 0], sizes = [2, 3, 16], strides = [1, 1, 1]} : vector<2x7x16xf32> to vector<2x3x16xf32>
    %95 = vector.extract_strided_slice %93 {offsets = [0, 1, 0], sizes = [2, 3, 16], strides = [1, 1, 1]} : vector<2x7x16xf32> to vector<2x3x16xf32>
    %96 = vector.extract_strided_slice %93 {offsets = [0, 2, 0], sizes = [2, 3, 16], strides = [1, 1, 1]} : vector<2x7x16xf32> to vector<2x3x16xf32>
    %97 = vector.extract_strided_slice %93 {offsets = [0, 3, 0], sizes = [2, 3, 16], strides = [1, 1, 1]} : vector<2x7x16xf32> to vector<2x3x16xf32>
    %98 = vector.extract_strided_slice %93 {offsets = [0, 4, 0], sizes = [2, 3, 16], strides = [1, 1, 1]} : vector<2x7x16xf32> to vector<2x3x16xf32>
    %99 = tpu.concatenate %94, %95, %96, %97, %98 in 2 : vector<2x3x16xf32>, vector<2x3x16xf32>, vector<2x3x16xf32>, vector<2x3x16xf32>, vector<2x3x16xf32> -> vector<2x3x80xf32>
    %c160 = arith.constant 160 : index
    %c0_29 = arith.constant 0 : index
    %100 = vector.load %arg2[%c160, %c0_29] : memref<272x16xbf16, #tpu.memory_space<vmem>>, vector<80x16xbf16>
    %101 = vector.shape_cast %99 : vector<2x3x80xf32> to vector<6x80xf32>
    %102 = arith.truncf %101 : vector<6x80xf32> to vector<6x80xbf16>
    %cst_30 = arith.constant dense<0.000000e+00> : vector<6x16xf32>
    %103 = tpu.matmul %102, %100, %cst_30 {dimension_numbers = #tpu.dot_dimension_numbers<[1], [0], [0], [1], [0, 0, 1, 1], [], []>} : vector<6x80xbf16>, vector<80x16xbf16>, vector<6x16xf32> -> vector<6x16xf32>
    %104 = vector.broadcast %71 : vector<1x16xf32> to vector<6x16xf32>
    %105 = arith.addf %103, %104 : vector<6x16xf32>
    %106 = arith.truncf %55 : vector<6x8xf32> to vector<6x8xbf16>
    %c240 = arith.constant 240 : index
    %c0_31 = arith.constant 0 : index
    %107 = vector.load %arg2[%c240, %c0_31] : memref<272x16xbf16, #tpu.memory_space<vmem>>, vector<8x16xbf16>
    %cst_32 = arith.constant dense<0.000000e+00> : vector<6x16xf32>
    %108 = tpu.matmul %106, %107, %cst_32 {dimension_numbers = #tpu.dot_dimension_numbers<[1], [0], [0], [1], [0, 0, 1, 1], [], []>} : vector<6x8xbf16>, vector<8x16xbf16>, vector<6x16xf32> -> vector<6x16xf32>
    %109 = vector.broadcast %72 : vector<1x16xf32> to vector<6x16xf32>
    %110 = arith.addf %108, %109 : vector<6x16xf32>
    %111 = arith.addf %105, %110 : vector<6x16xf32>
    %cst_33 = arith.constant 0.000000e+00 : f32
    %112 = vector.broadcast %cst_33 : f32 to vector<6x16xf32>
    %113 = arith.maximumf %111, %112 : vector<6x16xf32>
    %cst_34 = arith.constant 9.99999997E-7 : f32
    %114 = vector.broadcast %cst_34 : f32 to vector<6x16xf32>
    %115 = arith.maximumf %113, %114 : vector<6x16xf32>
    %c40 = arith.constant 40 : index
    %c0_35 = arith.constant 0 : index
    %116 = vector.load %arg3[%c40, %c0_35] : memref<56x32xf32, #tpu.memory_space<vmem>>, vector<6x6xf32>
    %117 = arith.mulf %115, %115 : vector<6x16xf32>
    %118 = arith.mulf %117, %115 : vector<6x16xf32>
    %cst_36 = arith.constant dense<0.000000e+00> : vector<6x16xf32>
    %119 = tpu.matmul %116, %118, %cst_36 {dimension_numbers = #tpu.dot_dimension_numbers<[1], [0], [0], [1], [0, 0, 1, 1], [], []>} : vector<6x6xf32>, vector<6x16xf32>, vector<6x16xf32> -> vector<6x16xf32>
    %120 = math.log %119 : vector<6x16xf32>
    %cst_37 = arith.constant 0.333333343 : f32
    %121 = vector.broadcast %cst_37 : f32 to vector<6x16xf32>
    %122 = arith.mulf %120, %121 : vector<6x16xf32>
    %123 = math.exp %122 : vector<6x16xf32>
    %124 = arith.truncf %123 : vector<6x16xf32> to vector<6x16xbf16>
    %c256 = arith.constant 256 : index
    %c0_38 = arith.constant 0 : index
    %125 = vector.load %arg2[%c256, %c0_38] : memref<272x16xbf16, #tpu.memory_space<vmem>>, vector<16x16xbf16>
    %cst_39 = arith.constant dense<0.000000e+00> : vector<6x16xf32>
    %126 = tpu.matmul %124, %125, %cst_39 {dimension_numbers = #tpu.dot_dimension_numbers<[1], [0], [0], [1], [0, 0, 1, 1], [], []>} : vector<6x16xbf16>, vector<16x16xbf16>, vector<6x16xf32> -> vector<6x16xf32>
    %c32_40 = arith.constant 32 : index
    %c0_41 = arith.constant 0 : index
    %127 = vector.load %arg3[%c32_40, %c0_41] : memref<56x32xf32, #tpu.memory_space<vmem>>, vector<1x16xf32>
    %128 = vector.broadcast %127 : vector<1x16xf32> to vector<6x16xf32>
    %129 = arith.addf %126, %128 : vector<6x16xf32>
    %cst_42 = arith.constant 0.000000e+00 : f32
    %130 = vector.broadcast %cst_42 : f32 to vector<6x16xf32>
    %131 = arith.subf %130, %129 : vector<6x16xf32>
    %132 = math.exp %131 : vector<6x16xf32>
    %cst_43 = arith.constant 1.000000e+00 : f32
    %133 = vector.broadcast %cst_43 : f32 to vector<6x16xf32>
    %134 = arith.addf %133, %132 : vector<6x16xf32>
    %135 = tpu.reciprocal %134 {approx = true} : vector<6x16xf32> -> vector<6x16xf32>
    %136 = arith.mulf %129, %135 : vector<6x16xf32>
    %137 = arith.maximumf %68, %136 : vector<6x16xf32>
    %138 = arith.addf %123, %137 : vector<6x16xf32>
    %c48 = arith.constant 48 : index
    %c0_44 = arith.constant 0 : index
    %139 = vector.load %arg3[%c48, %c0_44] : memref<56x32xf32, #tpu.memory_space<vmem>>, vector<2x6xf32>
    %cst_45 = arith.constant dense<0.000000e+00> : vector<2x16xf32>
    %140 = tpu.matmul %139, %138, %cst_45 {dimension_numbers = #tpu.dot_dimension_numbers<[1], [0], [0], [1], [0, 0, 1, 1], [], []>} : vector<2x6xf32>, vector<6x16xf32>, vector<2x16xf32> -> vector<2x16xf32>
    %c0_46 = arith.constant 0 : index
    %c0_47 = arith.constant 0 : index
    %141 = vector.load %arg4[%c0_46, %c0_47] : memref<2x16xf32, #tpu.memory_space<vmem>>, vector<2x16xf32>
    tpu.vector_store %arg4[%c0_46, %c0_47], %140 {strides = array<i32>} : memref<2x16xf32, #tpu.memory_space<vmem>>, vector<2x16xf32>,
    return
  }
  func.func @transform_0(%arg0: i32) -> (i32, i32, i32) {
    %c0_i32 = arith.constant 0 : i32
    %c0_i32_0 = arith.constant 0 : i32
    %c0_i32_1 = arith.constant 0 : i32
    return %arg0, %c0_i32, %c0_i32_0 : i32, i32, i32
  }
  func.func @transform_1(%arg0: i32) -> (i32, i32) {
    %c0_i32 = arith.constant 0 : i32
    %c0_i32_0 = arith.constant 0 : i32
    %c0_i32_1 = arith.constant 0 : i32
    return %c0_i32, %c0_i32_0 : i32, i32
  }
  func.func @transform_2(%arg0: i32) -> (i32, i32) {
    %c0_i32 = arith.constant 0 : i32
    %c0_i32_0 = arith.constant 0 : i32
    %c0_i32_1 = arith.constant 0 : i32
    return %c0_i32, %c0_i32_0 : i32, i32
  }
  func.func @transform_3(%arg0: i32) -> (i32, i32) {
    %c0_i32 = arith.constant 0 : i32
    %c0_i32_0 = arith.constant 0 : i32
    return %arg0, %c0_i32 : i32, i32
  }
}

</mosaic_0001>

<llo_original>
// kernel: forward.1
$region0: #{forward.1}
  #allocation0 [shape = 'u32[]', space=smem, size = 0x4, offset = 0x4, fixed_abs, tag = 'smem constant byte address 0x4 - core index']
  #allocation1 [shape = 'u32[144,128]{1,0:T(1,128)}', space=vmem, size = 0x12000, scoped, tag = 'internal scratch']
  %s0 = inlined_call_operand.vmem [shape: f32[2,16,4], index: 0, kind: input, shape index: {}]
  %s1 = inlined_call_operand.hbm [shape: bf16[272,16], index: 1, kind: input, shape index: {}]
  %s2 = inlined_call_operand.hbm [shape: f32[56,32], index: 2, kind: input, shape index: {}]
  %s3 = inlined_call_operand.hbm [shape: f32[2,16], index: 3, kind: output, shape index: {}]
  %s4 = sld [smem:[#allocation0]]
  $region30: #{forward.1} parent=0
    _
  %s6 = ssub.s32 1, %s4
  %s7 = scalar_select 0, %s6, %s4
  $region1: #{forward.1} parent=0
    #allocation2 [shape = 'u8[69632]{0}', space=vmem, size = 0x11000, scoped, tag = 'input window, operand 1, single buffered']
    #allocation3 [shape = 's32[1]{0}', space=sflag, size = 0x4, scoped, tag = 'scoped memory for forward.1']
    #allocation4 [shape = 's32[1]{0}', space=sflag, size = 0x4, scoped, tag = 'scoped memory for forward.1']
    #allocation5 [shape = 'u8[28672]{0}', space=vmem, size = 0x7000, scoped, tag = 'input window, operand 2, single buffered']
    #allocation6 [shape = 's32[1]{0}', space=sflag, size = 0x4, scoped, tag = 'scoped memory for forward.1']
    #allocation7 [shape = 'u8[1024]{0}', space=vmem, size = 0x400, scoped, tag = 'output window, operand 0, single buffered']
    %8 = vsyncpa [#allocation3], 0
    %9 = vsyncpa [#allocation6], 0
    %10 = vsyncpa [#allocation4], 0
    // Predicated region
    $region2: #{forward.1} parent=1 // pred_check
      _
    $region3: #{forward.1} parent=1 // pred_check_branch
      %12 = sbr.rel (0) target = $region5
    $region4: #{forward.1} parent=1 // pred_region
      _
    $region5: #{forward.1} parent=1 // pred_fallthru
      _
    // Predicated region
    $region6: #{forward.1} parent=1 // pred_check
      _
    $region7: #{forward.1} parent=1 // pred_check_branch
      %14 = sbr.rel (0) target = $region9
    $region8: #{forward.1} parent=1 // pred_region
      %s16 = ssub.s32 2176, 2176
      %17 = vsyncadd [#allocation3], %s16
      %s18 = sshll.u32 [#allocation2], 4
      %s19 = int_to_ptr.vmem [resolvable:$true] %s18
      %24 = dma.hbm_to_vmem [thread:$0]  %s1, 2176, %s19, [#allocation3], 64, 64, 4
    $region9: #{forward.1} parent=1 // pred_fallthru
      _
    // Predicated region
    $region10: #{forward.1} parent=1 // pred_check
      _
    $region11: #{forward.1} parent=1 // pred_check_branch
      %26 = sbr.rel (0) target = $region13
    $region12: #{forward.1} parent=1 // pred_region
      %s28 = ssub.s32 896, 896
      %29 = vsyncadd [#allocation6], %s28
      %s30 = sshll.u32 [#allocation5], 4
      %s31 = int_to_ptr.vmem [resolvable:$true] %s30
      %36 = dma.hbm_to_vmem [thread:$0]  %s2, 896, %s31, [#allocation6], 128, 128, 8
    $region13: #{forward.1} parent=1 // pred_fallthru
      _
    // Predicated region
    $region14: #{forward.1} parent=1 // pred_check
      _
    $region15: #{forward.1} parent=1 // pred_check_branch
      %38 = sbr.rel (0) target = $region17
    $region16: #{forward.1} parent=1 // pred_region
      %39 = dma.done [#allocation3], 2176
    $region17: #{forward.1} parent=1 // pred_fallthru
      _
    // Predicated region
    $region18: #{forward.1} parent=1 // pred_check
      _
    $region19: #{forward.1} parent=1 // pred_check_branch
      %41 = sbr.rel (0) target = $region21
    $region20: #{forward.1} parent=1 // pred_region
      %42 = dma.done [#allocation6], 896
    $region21: #{forward.1} parent=1 // pred_fallthru
      _
    %v44 = vld [vmem:[%s0] sm:$0xff]
    %v45 = vld [vmem:[%s0 + $0x8] sm:$0xff]
    %v46 = vld [vmem:[%s0 + $0x10] sm:$0xff]
    %v47 = vld [vmem:[%s0 + $0x18] sm:$0xff]
    %v48 = vld [vmem:[#allocation5] sm:$0x1]
    %v49 = vld [vmem:[#allocation5 + $0x1] sm:$0x1]
    %v50 = vld [vmem:[#allocation5 + $0x2] sm:$0x1]
    %v53 = vrot.slane %v44, 7
    %v54 = vrot.slane %v46, 7
    %vm59 = vcmask 1041408
    %v60 = vrot.slane %v44, 6
    %v61 = vrot.slane %v45, 6
    %v62 = vsel %vm59, %v60, %v61
    %v63 = vrot.slane %v46, 6
    %v64 = vrot.slane %v47, 6
    %v65 = vsel %vm59, %v63, %v64
    %v72 = vrot.slane %v45, 5
    %v73 = vrot.slane %v47, 5
    %v76 = vrot.slane %v45, 4
    %v77 = vrot.slane %v47, 4
    %vm80 = vcmask 1040384
    %v81 = vsel %vm80, %v44, %v53
    %v82 = vsel %vm80, %v46, %v54
    %v83 = vsel %vm59, %v81, %v60
    %v84 = vsel %vm59, %v82, %v63
    %v85 = vsel %vm59, %v61, %v72
    %v86 = vsel %vm59, %v64, %v73
    %vm87 = vcmask 1042432
    %v88 = vsel %vm87, %v85, %v76
    %v89 = vsel %vm87, %v86, %v77
    %vm94 = vcmask 1046528
    %v95 = vrot.slane %v83, 1
    %v96 = vrot.slane %v62, 1
    %v97 = vsel %vm94, %v95, %v96
    %v98 = vrot.slane %v88, 1
    %v99 = vsel %vm94, %v96, %v98
    %v100 = vrot.slane %v84, 1
    %v101 = vrot.slane %v65, 1
    %v102 = vsel %vm94, %v100, %v101
    %v103 = vrot.slane %v89, 1
    %v104 = vsel %vm94, %v101, %v103
    %105 = vrot.lane.b32.xlu0 %v97, 4
    %v106 = vpop.permute.xlu0 %105
    %107 = vrot.lane.b32.xlu0 %v99, 4
    %v108 = vpop.permute.xlu0 %107
    %109 = vrot.lane.b32.xlu0 %v102, 4
    %v110 = vpop.permute.xlu0 %109
    %111 = vrot.lane.b32.xlu0 %v104, 4
    %v112 = vpop.permute.xlu0 %111
    %vm117 = vcmask 1045504
    %v118 = vrot.slane %v83, 2
    %v119 = vrot.slane %v62, 2
    %v120 = vsel %vm117, %v118, %v119
    %v121 = vrot.slane %v88, 2
    %v122 = vsel %vm117, %v119, %v121
    %v123 = vrot.slane %v84, 2
    %v124 = vrot.slane %v65, 2
    %v125 = vsel %vm117, %v123, %v124
    %v126 = vrot.slane %v89, 2
    %v127 = vsel %vm117, %v124, %v126
    %128 = vrot.lane.b32.xlu0 %v120, 8
    %v129 = vpop.permute.xlu0 %128
    %130 = vrot.lane.b32.xlu0 %v122, 8
    %v131 = vpop.permute.xlu0 %130
    %132 = vrot.lane.b32.xlu0 %v125, 8
    %v133 = vpop.permute.xlu0 %132
    %134 = vrot.lane.b32.xlu0 %v127, 8
    %v135 = vpop.permute.xlu0 %134
    %vm140 = vcmask 1044480
    %v141 = vrot.slane %v83, 3
    %v142 = vrot.slane %v62, 3
    %v143 = vsel %vm140, %v141, %v142
    %v144 = vrot.slane %v88, 3
    %v145 = vsel %vm140, %v142, %v144
    %v146 = vrot.slane %v84, 3
    %v147 = vrot.slane %v65, 3
    %v148 = vsel %vm140, %v146, %v147
    %v149 = vrot.slane %v89, 3
    %v150 = vsel %vm140, %v147, %v149
    %151 = vrot.lane.b32.xlu0 %v143, 12
    %v152 = vpop.permute.xlu0 %151
    %153 = vrot.lane.b32.xlu0 %v145, 12
    %v154 = vpop.permute.xlu0 %153
    %155 = vrot.lane.b32.xlu0 %v148, 12
    %v156 = vpop.permute.xlu0 %155
    %157 = vrot.lane.b32.xlu0 %v150, 12
    %v158 = vpop.permute.xlu0 %157
    %vm163 = vcmask 1043456
    %v164 = vrot.slane %v83, 4
    %v165 = vrot.slane %v62, 4
    %v166 = vsel %vm163, %v164, %v165
    %v167 = vrot.slane %v88, 4
    %v168 = vsel %vm163, %v165, %v167
    %v169 = vrot.slane %v84, 4
    %v170 = vrot.slane %v65, 4
    %v171 = vsel %vm163, %v169, %v170
    %v172 = vrot.slane %v89, 4
    %v173 = vsel %vm163, %v170, %v172
    %174 = vrot.lane.b32.xlu0 %v166, 16
    %v175 = vpop.permute.xlu0 %174
    %176 = vrot.lane.b32.xlu0 %v168, 16
    %v177 = vpop.permute.xlu0 %176
    %178 = vrot.lane.b32.xlu0 %v171, 16
    %v179 = vpop.permute.xlu0 %178
    %180 = vrot.lane.b32.xlu0 %v173, 16
    %v181 = vpop.permute.xlu0 %180
    %vm186 = vcmask 31744
    %v187 = vsel %vm186, %v83, %v106
    %v188 = vsel %vm186, %v62, %v108
    %v189 = vsel %vm186, %v84, %v110
    %v190 = vsel %vm186, %v65, %v112
    %vm191 = vcmask 64512
    %v192 = vsel %vm191, %v187, %v129
    %v193 = vsel %vm191, %v188, %v131
    %v194 = vsel %vm191, %v189, %v133
    %v195 = vsel %vm191, %v190, %v135
    %vm196 = vcmask 97280
    %v197 = vsel %vm196, %v192, %v152
    %v198 = vsel %vm196, %v193, %v154
    %v199 = vsel %vm196, %v194, %v156
    %v200 = vsel %vm196, %v195, %v158
    %vm201 = vcmask 130048
    %v202 = vsel %vm201, %v197, %v175
    %v203 = vsel %vm201, %v198, %v177
    %v204 = vsel %vm201, %v199, %v179
    %v205 = vsel %vm201, %v200, %v181
    %v206 = vld [vmem:[#allocation2] sm:$0xf]
    %v207 = vld [vmem:[#allocation2 + $0x4] sm:$0xf]
    %v208 = vld [vmem:[#allocation2 + $0x8] sm:$0x3]
    %v209 = vpack.c.bf16 %v203, %v202
    %v210 = vpack.c.bf16 %v205, %v204
    %v211 = vlaneseq
    %v212 = vshrl.u32 %v211, 7
    %v213 = vsub.s32 0, %v212
    %v214 = vrot.slane %v48, %v213
    %v218 = vunpack.c.l.b16 %v206
    %v219 = vunpack.c.l.b16 %v207
    %v220 = vunpack.c.l.b16 %v208
    %v221 = vpack.c.b16 %v219, %v218
    %v222 = vpack.c.b16 %v220, %v220
    %vm224 = vcmask 162816
    %v226 = vsel %vm224, %v209, 0
    %v229 = vsel %vm224, %v210, 0
    %v232 = vsel %vm59, %v222, 0
    %234 = vmatprep.subr.bf16.mxu0 0
    %235 = vmatpush1.bf16.msra.mxu0 %v221
    %236 = vmatprep.subr.bf16.mxu0 0
    %237 = vmatpush1.bf16.msra.mxu0 %v232
    %238 = vmatprep.subr.bf16.mxu0 0
    %239 = vmatpush1.bf16.msra.mxu0 0
    %240 = vmatprep.subr.bf16.mxu0 0
    %241 = vmatpush1.bf16.msra.mxu0 0
    %242 = vmatprep.subr.bf16.mxu0 0
    %243 = vmatpush1.bf16.msra.mxu0 0
    %244 = vmatprep.subr.bf16.mxu0 0
    %245 = vmatpush1.bf16.msra.mxu0 0
    %246 = vmatprep.subr.bf16.mxu0 0
    %247 = vmatpush1.bf16.msra.mxu0 0
    %248 = vmatprep.subr.bf16.mxu0 0
    %249 = vmatpush1.bf16.msra.mxu0 0
    %250 = vmatprep.subr.bf16.mxu0 0
    %251 = vmatpush1.bf16.msra.mxu0 0
    %252 = vmatprep.subr.bf16.mxu0 0
    %253 = vmatpush1.bf16.msra.mxu0 0
    %254 = vmatprep.subr.bf16.mxu0 0
    %255 = vmatpush1.bf16.msra.mxu0 0
    %256 = vmatprep.subr.bf16.mxu0 0
    %257 = vmatpush1.bf16.msra.mxu0 0
    %258 = vmatprep.subr.bf16.mxu0 0
    %259 = vmatpush1.bf16.msra.mxu0 0
    %260 = vmatprep.subr.bf16.mxu0 0
    %261 = vmatpush1.bf16.msra.mxu0 0
    %262 = vmatprep.subr.bf16.mxu0 0
    %263 = vmatpush1.bf16.msra.mxu0 0
    %264 = vmatprep.subr.bf16.mxu0 0
    %265 = vmatpush1.bf16.msra.mxu0 0
    %266 = vmatprep.mubr.bf16.mxu0 0
    %267 = vmatmul.mubr.bf16.gmra.mrb[0].mxu0 %v226
    %v268 = vpop.f32.mrb[0].mxu0
    %v269 = vadd.f32 %v214, %v268
    %v270 = vpop.f32.mrb[0].mxu0
    %v271 = vpop.f32.mrb[0].mxu0
    %v272 = vadd.f32 %v214, %v271
    %v273 = vpop.f32.mrb[0].mxu0
    %274 = vmatprep.mubr.bf16.mxu0 0
    %275 = vmatmul.mubr.bf16.gmra.mrb[0].mxu0 %v229
    %v276 = vpop.f32.mrb[0].mxu0
    %v277 = vadd.f32 %v214, %v276
    %v278 = vpop.f32.mrb[0].mxu0
    %v279 = vpop.f32.mrb[0].mxu0
    %v280 = vadd.f32 %v214, %v279
    %v281 = vpop.f32.mrb[0].mxu0
    %282 = vdwg.mxu0
    %v283 = vmax.f32 %v269, 0.0
    %v284 = vmax.f32 %v272, 0.0
    %v285 = vmax.f32 %v277, 0.0
    %v286 = vmax.f32 %v280, 0.0
    %v289 = vrot.slane %v283, 7
    %v290 = vrot.slane %v285, 7
    %v295 = vrot.slane %v283, 6
    %v296 = vrot.slane %v284, 6
    %v297 = vsel %vm59, %v295, %v296
    %v298 = vrot.slane %v285, 6
    %v299 = vrot.slane %v286, 6
    %v300 = vsel %vm59, %v298, %v299
    %v307 = vrot.slane %v284, 5
    %v308 = vrot.slane %v286, 5
    %v311 = vrot.slane %v284, 4
    %v312 = vrot.slane %v286, 4
    %v315 = vsel %vm80, %v283, %v289
    %v316 = vsel %vm80, %v285, %v290
    %v317 = vsel %vm59, %v315, %v295
    %v318 = vsel %vm59, %v316, %v298
    %v319 = vsel %vm59, %v296, %v307
    %v320 = vsel %vm59, %v299, %v308
    %v321 = vsel %vm87, %v319, %v311
    %v322 = vsel %vm87, %v320, %v312
    %v327 = vrot.slane %v317, 1
    %v328 = vrot.slane %v297, 1
    %v329 = vsel %vm94, %v327, %v328
    %v330 = vrot.slane %v321, 1
    %v331 = vsel %vm94, %v328, %v330
    %v332 = vrot.slane %v318, 1
    %v333 = vrot.slane %v300, 1
    %v334 = vsel %vm94, %v332, %v333
    %v335 = vrot.slane %v322, 1
    %v336 = vsel %vm94, %v333, %v335
    %337 = vrot.lane.b32.xlu0 %v329, 8
    %v338 = vpop.permute.xlu0 %337
    %339 = vrot.lane.b32.xlu0 %v331, 8
    %v340 = vpop.permute.xlu0 %339
    %341 = vrot.lane.b32.xlu0 %v334, 8
    %v342 = vpop.permute.xlu0 %341
    %343 = vrot.lane.b32.xlu0 %v336, 8
    %v344 = vpop.permute.xlu0 %343
    %v349 = vrot.slane %v317, 2
    %v350 = vrot.slane %v297, 2
    %v351 = vsel %vm117, %v349, %v350
    %v352 = vrot.slane %v321, 2
    %v353 = vsel %vm117, %v350, %v352
    %v354 = vrot.slane %v318, 2
    %v355 = vrot.slane %v300, 2
    %v356 = vsel %vm117, %v354, %v355
    %v357 = vrot.slane %v322, 2
    %v358 = vsel %vm117, %v355, %v357
    %359 = vrot.lane.b32.xlu0 %v351, 16
    %v360 = vpop.permute.xlu0 %359
    %361 = vrot.lane.b32.xlu0 %v353, 16
    %v362 = vpop.permute.xlu0 %361
    %363 = vrot.lane.b32.xlu0 %v356, 16
    %v364 = vpop.permute.xlu0 %363
    %365 = vrot.lane.b32.xlu0 %v358, 16
    %v366 = vpop.permute.xlu0 %365
    %v371 = vrot.slane %v317, 3
    %v372 = vrot.slane %v297, 3
    %v373 = vsel %vm140, %v371, %v372
    %v374 = vrot.slane %v321, 3
    %v375 = vsel %vm140, %v372, %v374
    %v376 = vrot.slane %v318, 3
    %v377 = vrot.slane %v300, 3
    %v378 = vsel %vm140, %v376, %v377
    %v379 = vrot.slane %v322, 3
    %v380 = vsel %vm140, %v377, %v379
    %381 = vrot.lane.b32.xlu0 %v373, 24
    %v382 = vpop.permute.xlu0 %381
    %383 = vrot.lane.b32.xlu0 %v375, 24
    %v384 = vpop.permute.xlu0 %383
    %385 = vrot.lane.b32.xlu0 %v378, 24
    %v386 = vpop.permute.xlu0 %385
    %387 = vrot.lane.b32.xlu0 %v380, 24
    %v388 = vpop.permute.xlu0 %387
    %v393 = vrot.slane %v317, 4
    %v394 = vrot.slane %v297, 4
    %v395 = vsel %vm163, %v393, %v394
    %v396 = vrot.slane %v321, 4
    %v397 = vsel %vm163, %v394, %v396
    %v398 = vrot.slane %v318, 4
    %v399 = vrot.slane %v300, 4
    %v400 = vsel %vm163, %v398, %v399
    %v401 = vrot.slane %v322, 4
    %v402 = vsel %vm163, %v399, %v401
    %403 = vrot.lane.b32.xlu0 %v395, 32
    %v404 = vpop.permute.xlu0 %403
    %405 = vrot.lane.b32.xlu0 %v397, 32
    %v406 = vpop.permute.xlu0 %405
    %407 = vrot.lane.b32.xlu0 %v400, 32
    %v408 = vpop.permute.xlu0 %407
    %409 = vrot.lane.b32.xlu0 %v402, 32
    %v410 = vpop.permute.xlu0 %409
    %v415 = vsel %vm191, %v317, %v338
    %v416 = vsel %vm191, %v297, %v340
    %v417 = vsel %vm191, %v318, %v342
    %v418 = vsel %vm191, %v300, %v344
    %v419 = vsel %vm201, %v415, %v360
    %v420 = vsel %vm201, %v416, %v362
    %v421 = vsel %vm201, %v417, %v364
    %v422 = vsel %vm201, %v418, %v366
    %vm423 = vcmask 195584
    %v424 = vsel %vm423, %v419, %v382
    %v425 = vsel %vm423, %v420, %v384
    %v426 = vsel %vm423, %v421, %v386
    %v427 = vsel %vm423, %v422, %v388
    %vm428 = vcmask 261120
    %v429 = vsel %vm428, %v424, %v404
    %v430 = vsel %vm428, %v425, %v406
    %v431 = vsel %vm428, %v426, %v408
    %v432 = vsel %vm428, %v427, %v410
    %v433 = vld [vmem:[#allocation2 + $0x10] sm:$0xf]
    %v434 = vld [vmem:[#allocation2 + $0x14] sm:$0xf]
    %v435 = vld [vmem:[#allocation2 + $0x18] sm:$0xf]
    %v436 = vld [vmem:[#allocation2 + $0x1c] sm:$0xf]
    %v437 = vld [vmem:[#allocation2 + $0x20] sm:$0xf]
    %v438 = vpack.c.bf16 %v430, %v429
    %v439 = vpack.c.bf16 %v432, %v431
    %v440 = vlaneseq
    %v441 = vshrl.u32 %v440, 7
    %v442 = vsub.s32 0, %v441
    %v443 = vrot.slane %v49, %v442
    %v449 = vunpack.c.l.b16 %v433
    %v450 = vunpack.c.l.b16 %v434
    %v451 = vunpack.c.l.b16 %v435
    %v452 = vunpack.c.l.b16 %v436
    %v453 = vunpack.c.l.b16 %v437
    %v454 = vpack.c.b16 %v450, %v449
    %v455 = vpack.c.b16 %v452, %v451
    %v456 = vpack.c.b16 %v453, %v453
    %vm459 = vcmask 326656
    %v461 = vsel %vm459, %v438, 0
    %v464 = vsel %vm459, %v439, 0
    %v467 = vsel %vm163, %v456, 0
    %469 = vmatprep.subr.bf16.mxu0 0
    %470 = vmatpush1.bf16.msra.mxu0 %v454
    %471 = vmatprep.subr.bf16.mxu0 0
    %472 = vmatpush1.bf16.msra.mxu0 %v455
    %473 = vmatprep.subr.bf16.mxu0 0
    %474 = vmatpush1.bf16.msra.mxu0 %v467
    %475 = vmatprep.subr.bf16.mxu0 0
    %476 = vmatpush1.bf16.msra.mxu0 0
    %477 = vmatprep.subr.bf16.mxu0 0
    %478 = vmatpush1.bf16.msra.mxu0 0
    %479 = vmatprep.subr.bf16.mxu0 0
    %480 = vmatpush1.bf16.msra.mxu0 0
    %481 = vmatprep.subr.bf16.mxu0 0
    %482 = vmatpush1.bf16.msra.mxu0 0
    %483 = vmatprep.subr.bf16.mxu0 0
    %484 = vmatpush1.bf16.msra.mxu0 0
    %485 = vmatprep.subr.bf16.mxu0 0
    %486 = vmatpush1.bf16.msra.mxu0 0
    %487 = vmatprep.subr.bf16.mxu0 0
    %488 = vmatpush1.bf16.msra.mxu0 0
    %489 = vmatprep.subr.bf16.mxu0 0
    %490 = vmatpush1.bf16.msra.mxu0 0
    %491 = vmatprep.subr.bf16.mxu0 0
    %492 = vmatpush1.bf16.msra.mxu0 0
    %493 = vmatprep.subr.bf16.mxu0 0
    %494 = vmatpush1.bf16.msra.mxu0 0
    %495 = vmatprep.subr.bf16.mxu0 0
    %496 = vmatpush1.bf16.msra.mxu0 0
    %497 = vmatprep.subr.bf16.mxu0 0
    %498 = vmatpush1.bf16.msra.mxu0 0
    %499 = vmatprep.subr.bf16.mxu0 0
    %500 = vmatpush1.bf16.msra.mxu0 0
    %501 = vmatprep.mubr.bf16.mxu0 0
    %502 = vmatmul.mubr.bf16.gmra.mrb[0].mxu0 %v461
    %v503 = vpop.f32.mrb[0].mxu0
    %v504 = vadd.f32 %v443, %v503
    %v505 = vpop.f32.mrb[0].mxu0
    %v506 = vpop.f32.mrb[0].mxu0
    %v507 = vadd.f32 %v443, %v506
    %v508 = vpop.f32.mrb[0].mxu0
    %509 = vmatprep.mubr.bf16.mxu0 0
    %510 = vmatmul.mubr.bf16.gmra.mrb[0].mxu0 %v464
    %v511 = vpop.f32.mrb[0].mxu0
    %v512 = vadd.f32 %v443, %v511
    %v513 = vpop.f32.mrb[0].mxu0
    %v514 = vpop.f32.mrb[0].mxu0
    %v515 = vadd.f32 %v443, %v514
    %v516 = vpop.f32.mrb[0].mxu0
    %517 = vdwg.mxu0
    %v518 = vpack.c.bf16 %v45, %v44
    %v519 = vpack.c.bf16 %v47, %v46
    %v520 = vld [vmem:[#allocation2 + $0x28] sm:$0x3]
    %v521 = vlaneseq
    %v522 = vshrl.u32 %v521, 7
    %v523 = vsub.s32 0, %v522
    %v524 = vrot.slane %v50, %v523
    %v526 = vsel %vm186, %v518, 0
    %v529 = vsel %vm186, %v519, 0
    %v532 = vsel %vm59, %v520, 0
    %534 = vmatprep.subr.bf16.mxu0 0
    %535 = vmatpush1.bf16.msra.mxu0 %v532
    %536 = vmatprep.subr.bf16.mxu0 0
    %537 = vmatpush1.bf16.msra.mxu0 0
    %538 = vmatprep.subr.bf16.mxu0 0
    %539 = vmatpush1.bf16.msra.mxu0 0
    %540 = vmatprep.subr.bf16.mxu0 0
    %541 = vmatpush1.bf16.msra.mxu0 0
    %542 = vmatprep.subr.bf16.mxu0 0
    %543 = vmatpush1.bf16.msra.mxu0 0
    %544 = vmatprep.subr.bf16.mxu0 0
    %545 = vmatpush1.bf16.msra.mxu0 0
    %546 = vmatprep.subr.bf16.mxu0 0
    %547 = vmatpush1.bf16.msra.mxu0 0
    %548 = vmatprep.subr.bf16.mxu0 0
    %549 = vmatpush1.bf16.msra.mxu0 0
    %550 = vmatprep.subr.bf16.mxu0 0
    %551 = vmatpush1.bf16.msra.mxu0 0
    %552 = vmatprep.subr.bf16.mxu0 0
    %553 = vmatpush1.bf16.msra.mxu0 0
    %554 = vmatprep.subr.bf16.mxu0 0
    %555 = vmatpush1.bf16.msra.mxu0 0
    %556 = vmatprep.subr.bf16.mxu0 0
    %557 = vmatpush1.bf16.msra.mxu0 0
    %558 = vmatprep.subr.bf16.mxu0 0
    %559 = vmatpush1.bf16.msra.mxu0 0
    %560 = vmatprep.subr.bf16.mxu0 0
    %561 = vmatpush1.bf16.msra.mxu0 0
    %562 = vmatprep.subr.bf16.mxu0 0
    %563 = vmatpush1.bf16.msra.mxu0 0
    %564 = vmatprep.subr.bf16.mxu0 0
    %565 = vmatpush1.bf16.msra.mxu0 0
    %566 = vmatprep.mubr.bf16.mxu0 0
    %567 = vmatmul.mubr.bf16.gmra.mrb[0].mxu0 %v526
    %v568 = vpop.f32.mrb[0].mxu0
    %v569 = vadd.f32 %v524, %v568
    %v570 = vpop.f32.mrb[0].mxu0
    %v571 = vpop.f32.mrb[0].mxu0
    %v572 = vadd.f32 %v524, %v571
    %v573 = vpop.f32.mrb[0].mxu0
    %574 = vmatprep.mubr.bf16.mxu0 0
    %575 = vmatmul.mubr.bf16.gmra.mrb[0].mxu0 %v529
    %v576 = vpop.f32.mrb[0].mxu0
    %v577 = vadd.f32 %v524, %v576
    %v578 = vpop.f32.mrb[0].mxu0
    %v579 = vpop.f32.mrb[0].mxu0
    %v580 = vadd.f32 %v524, %v579
    %v581 = vpop.f32.mrb[0].mxu0
    %582 = vdwg.mxu0
    %v583 = vadd.f32 %v504, %v569
    %v584 = vadd.f32 %v507, %v572
    %v585 = vadd.f32 %v512, %v577
    %v586 = vadd.f32 %v515, %v580
    %v587 = vmax.f32 %v583, 0.0
    %v588 = vmax.f32 %v584, 0.0
    %v589 = vmax.f32 %v585, 0.0
    %v590 = vmax.f32 %v586, 0.0
    %v591 = vmax.f32 %v587, 1e-06
    %v592 = vmax.f32 %v588, 1e-06
    %v593 = vmax.f32 %v589, 1e-06
    %v594 = vmax.f32 %v590, 1e-06
    %v595 = vld [vmem:[#allocation5 + $0x10] sm:$0x3f]
    %v596 = vmul.f32 %v591, %v591
    %v597 = vmul.f32 %v592, %v592
    %v598 = vmul.f32 %v593, %v593
    %v599 = vmul.f32 %v594, %v594
    %v600 = vmul.f32 %v596, %v591
    %v601 = vmul.f32 %v597, %v592
    %v602 = vmul.f32 %v598, %v593
    %v603 = vmul.f32 %v599, %v594
    %v605 = vsel %vm428, %v595, 0
    %607 = vmatprep.subr.mxu0 0.0
    %608 = vmatpush1.msra.mxu0 %v600
    %609 = vmatprep.subr.mxu0 0.0
    %610 = vmatpush1.msra.mxu0 %v601
    %611 = vmatprep.subr.mxu0 0.0
    %612 = vmatpush1.msra.mxu0 %v602
    %613 = vmatprep.subr.mxu0 0.0
    %614 = vmatpush1.msra.mxu0 %v603
    %615 = vmatprep.subr.mxu0 0.0
    %616 = vmatpush1.msra.mxu0 0.0
    %617 = vmatprep.subr.mxu0 0.0
    %618 = vmatpush1.msra.mxu0 0.0
    %619 = vmatprep.subr.mxu0 0.0
    %620 = vmatpush1.msra.mxu0 0.0
    %621 = vmatprep.subr.mxu0 0.0
    %622 = vmatpush1.msra.mxu0 0.0
    %623 = vmatprep.subr.mxu0 0.0
    %624 = vmatpush1.msra.mxu0 0.0
    %625 = vmatprep.subr.mxu0 0.0
    %626 = vmatpush1.msra.mxu0 0.0
    %627 = vmatprep.subr.mxu0 0.0
    %628 = vmatpush1.msra.mxu0 0.0
    %629 = vmatprep.subr.mxu0 0.0
    %630 = vmatpush1.msra.mxu0 0.0
    %631 = vmatprep.subr.mxu0 0.0
    %632 = vmatpush1.msra.mxu0 0.0
    %633 = vmatprep.subr.mxu0 0.0
    %634 = vmatpush1.msra.mxu0 0.0
    %635 = vmatprep.subr.mxu0 0.0
    %636 = vmatpush1.msra.mxu0 0.0
    %637 = vmatprep.subr.mxu0 0.0
    %638 = vmatpush1.msra.mxu0 0.0
    %639 = vmatprep.subr.mxu0 0.0
    %640 = vmatpush1.msra.mxu0 0.0
    %641 = vmatprep.subr.mxu0 0.0
    %642 = vmatpush1.msra.mxu0 0.0
    %643 = vmatprep.subr.mxu0 0.0
    %644 = vmatpush1.msra.mxu0 0.0
    %645 = vmatprep.subr.mxu0 0.0
    %646 = vmatpush1.msra.mxu0 0.0
    %647 = vmatprep.subr.mxu0 0.0
    %648 = vmatpush1.msra.mxu0 0.0
    %649 = vmatprep.subr.mxu0 0.0
    %650 = vmatpush1.msra.mxu0 0.0
    %651 = vmatprep.subr.mxu0 0.0
    %652 = vmatpush1.msra.mxu0 0.0
    %653 = vmatprep.subr.mxu0 0.0
    %654 = vmatpush1.msra.mxu0 0.0
    %655 = vmatprep.subr.mxu0 0.0
    %656 = vmatpush1.msra.mxu0 0.0
    %657 = vmatprep.subr.mxu0 0.0
    %658 = vmatpush1.msra.mxu0 0.0
    %659 = vmatprep.subr.mxu0 0.0
    %660 = vmatpush1.msra.mxu0 0.0
    %661 = vmatprep.subr.mxu0 0.0
    %662 = vmatpush1.msra.mxu0 0.0
    %663 = vmatprep.subr.mxu0 0.0
    %664 = vmatpush1.msra.mxu0 0.0
    %665 = vmatprep.subr.mxu0 0.0
    %666 = vmatpush1.msra.mxu0 0.0
    %667 = vmatprep.subr.mxu0 0.0
    %668 = vmatpush1.msra.mxu0 0.0
    %669 = vmatprep.subr.mxu0 0.0
    %670 = vmatpush1.msra.mxu0 0.0
    %671 = vmatprep.mubr.f32.mxu0 0.0
    %672 = vmatmul.mubr.f32.gmra.mrb[0].mxu0 %v605
    %v673 = vpop.f32.mrb[0].mxu0
    %v674 = vadd.f32 0.0, %v673
    %v675 = vpop.f32.mrb[0].mxu0
    %676 = vdwg.mxu0
    %v677 = vlog2.pop %v674
    %v678 = vmul.f32 %v677, 0.6931472
    %v679 = vmul.f32 %v678, 0.33333334
    %v680 = vmul.f32 %v679, 1.442695
    %v681 = vpow.pop %v680
    %v682 = vpack.c.bf16 %v681, %v681
    %v683 = vld [vmem:[#allocation2 + $0x30] sm:$0xf]
    %v684 = vld [vmem:[#allocation5 + $0x8] sm:$0x1]
    %v685 = vlaneseq
    %v686 = vshrl.u32 %v685, 7
    %v687 = vsub.s32 0, %v686
    %v688 = vrot.slane %v684, %v687
    %v690 = vsel %vm191, %v682, 0
    %v693 = vsel %vm163, %v683, 0
    %695 = vmatprep.subr.bf16.mxu0 0
    %696 = vmatpush1.bf16.msra.mxu0 %v693
    %697 = vmatprep.subr.bf16.mxu0 0
    %698 = vmatpush1.bf16.msra.mxu0 0
    %699 = vmatprep.subr.bf16.mxu0 0
    %700 = vmatpush1.bf16.msra.mxu0 0
    %701 = vmatprep.subr.bf16.mxu0 0
    %702 = vmatpush1.bf16.msra.mxu0 0
    %703 = vmatprep.subr.bf16.mxu0 0
    %704 = vmatpush1.bf16.msra.mxu0 0
    %705 = vmatprep.subr.bf16.mxu0 0
    %706 = vmatpush1.bf16.msra.mxu0 0
    %707 = vmatprep.subr.bf16.mxu0 0
    %708 = vmatpush1.bf16.msra.mxu0 0
    %709 = vmatprep.subr.bf16.mxu0 0
    %710 = vmatpush1.bf16.msra.mxu0 0
    %711 = vmatprep.subr.bf16.mxu0 0
    %712 = vmatpush1.bf16.msra.mxu0 0
    %713 = vmatprep.subr.bf16.mxu0 0
    %714 = vmatpush1.bf16.msra.mxu0 0
    %715 = vmatprep.subr.bf16.mxu0 0
    %716 = vmatpush1.bf16.msra.mxu0 0
    %717 = vmatprep.subr.bf16.mxu0 0
    %718 = vmatpush1.bf16.msra.mxu0 0
    %719 = vmatprep.subr.bf16.mxu0 0
    %720 = vmatpush1.bf16.msra.mxu0 0
    %721 = vmatprep.subr.bf16.mxu0 0
    %722 = vmatpush1.bf16.msra.mxu0 0
    %723 = vmatprep.subr.bf16.mxu0 0
    %724 = vmatpush1.bf16.msra.mxu0 0
    %725 = vmatprep.subr.bf16.mxu0 0
    %726 = vmatpush1.bf16.msra.mxu0 0
    %727 = vmatprep.mubr.bf16.mxu0 0
    %728 = vmatmul.mubr.bf16.gmra.mrb[0].mxu0 %v690
    %v729 = vpop.f32.mrb[0].mxu0
    %v730 = vadd.f32 %v688, %v729
    %v731 = vpop.f32.mrb[0].mxu0
    %v732 = vpop.f32.mrb[0].mxu0
    %v733 = vpop.f32.mrb[0].mxu0
    %734 = vdwg.mxu0
    %v735 = vsub.f32 0.0, %v730
    %v736 = vmul.f32 %v735, 1.442695
    %v737 = vpow.pop %v736
    %v738 = vadd.f32 %v737, 1.0
    %v739 = vrcp.pop %v738
    %v740 = vmul.f32 %v730, %v739
    %v742 = vcombine.high %v681, %v681
    %v744 = vunpack.c.l.s4 1966171168
    %v745 = vunpack.c.0.s8 %v744
    %v746 = vlaneseq
    %v747 = vshrl.u32 %v746, 7
    %v748 = vsub.s32 %v745, %v747
    %v749 = vrot.slane %v681, %v748
    %v751 = vunpack.c.l.s4 1966171168
    %v752 = vunpack.c.0.s8 %v751
    %v753 = vlaneseq
    %v754 = vshrl.u32 %v753, 7
    %v755 = vsub.s32 %v752, %v754
    %v756 = vrot.slane %v742, %v755
    %v757 = vcombine.high %v749, %v749
    %v758 = vcombine.high %v756, %v756
    %v760 = vunpack.c.l.s4 1966171168
    %v761 = vunpack.c.0.s8 %v760
    %v762 = vlaneseq
    %v763 = vshrl.u32 %v762, 7
    %v764 = vsub.s32 %v761, %v763
    %v765 = vrot.slane %v749, %v764
    %v767 = vunpack.c.l.s4 1966171168
    %v768 = vunpack.c.0.s8 %v767
    %v769 = vlaneseq
    %v770 = vshrl.u32 %v769, 7
    %v771 = vsub.s32 %v768, %v770
    %v772 = vrot.slane %v756, %v771
    %v774 = vunpack.c.l.s4 1966171168
    %v775 = vunpack.c.0.s8 %v774
    %v776 = vlaneseq
    %v777 = vshrl.u32 %v776, 7
    %v778 = vsub.s32 %v775, %v777
    %v779 = vrot.slane %v757, %v778
    %v781 = vunpack.c.l.s4 1966171168
    %v782 = vunpack.c.0.s8 %v781
    %v783 = vlaneseq
    %v784 = vshrl.u32 %v783, 7
    %v785 = vsub.s32 %v782, %v784
    %v786 = vrot.slane %v758, %v785
    %v787 = vcombine.high %v765, %v765
    %v788 = vcombine.high %v779, %v779
    %v791 = vld [vmem:[#allocation5 + $0x18] sm:$0x1]
    %v792 = vld [vmem:[#allocation5 + $0x19] sm:$0x1]
    %v793 = vld [vmem:[#allocation5 + $0x1a] sm:$0x1]
    %v794 = vlaneseq
    %v795 = vshrl.u32 %v794, 7
    %v796 = vsub.s32 0, %v795
    %v797 = vrot.slane %v765, %v796
    %v798 = vlaneseq
    %v799 = vshrl.u32 %v798, 7
    %v800 = vsub.s32 0, %v799
    %v801 = vrot.slane %v788, %v800
    %v804 = vcombine.low %v765, %v779
    %v806 = vunpack.c.l.s4 1966171168
    %v807 = vunpack.c.0.s8 %v806
    %v808 = vlaneseq
    %v809 = vshrl.u32 %v808, 7
    %v810 = vsub.s32 %v807, %v809
    %v811 = vrot.slane %v804, %v810
    %v813 = vunpack.c.l.s4 1966171168
    %v814 = vunpack.c.0.s8 %v813
    %v815 = vlaneseq
    %v816 = vshrl.u32 %v815, 7
    %v817 = vsub.s32 %v814, %v816
    %v818 = vrot.slane %v787, %v817
    %v819 = vcombine.low %v811, %v811
    %v821 = vunpack.c.l.s4 1966171168
    %v822 = vunpack.c.0.s8 %v821
    %v823 = vlaneseq
    %v824 = vshrl.u32 %v823, 7
    %v825 = vsub.s32 %v822, %v824
    %v826 = vrot.slane %v819, %v825
    %v828 = vunpack.c.l.s4 1966171168
    %v829 = vunpack.c.0.s8 %v828
    %v830 = vlaneseq
    %v831 = vshrl.u32 %v830, 7
    %v832 = vsub.s32 %v829, %v831
    %v833 = vrot.slane %v818, %v832
    %v834 = vcombine.low %v826, %v833
    %v835 = vcombine.low %v788, %v772
    %v837 = vunpack.c.l.s4 1966171168
    %v838 = vunpack.c.0.s8 %v837
    %v839 = vlaneseq
    %v840 = vshrl.u32 %v839, 7
    %v841 = vsub.s32 %v838, %v840
    %v842 = vrot.slane %v835, %v841
    %v844 = vunpack.c.l.s4 1966171168
    %v845 = vunpack.c.0.s8 %v844
    %v846 = vlaneseq
    %v847 = vshrl.u32 %v846, 7
    %v848 = vsub.s32 %v845, %v847
    %v849 = vrot.slane %v786, %v848
    %v850 = vcombine.low %v842, %v842
    %v852 = vunpack.c.l.s4 1966171168
    %v853 = vunpack.c.0.s8 %v852
    %v854 = vlaneseq
    %v855 = vshrl.u32 %v854, 7
    %v856 = vsub.s32 %v853, %v855
    %v857 = vrot.slane %v850, %v856
    %v859 = vunpack.c.l.s4 1966171168
    %v860 = vunpack.c.0.s8 %v859
    %v861 = vlaneseq
    %v862 = vshrl.u32 %v861, 7
    %v863 = vsub.s32 %v860, %v862
    %v864 = vrot.slane %v849, %v863
    %v865 = vcombine.low %v857, %v864
    %v868 = vlaneseq
    %v869 = vshrl.u32 %v868, 7
    %v870 = vsub.s32 0, %v869
    %v871 = vrot.slane %v787, %v870
    %v872 = vlaneseq
    %v873 = vshrl.u32 %v872, 7
    %v874 = vsub.s32 0, %v873
    %v875 = vrot.slane %v786, %v874
    %v878 = vsel %vm80, %v765, %v797
    %v879 = vsel %vm80, %v788, %v801
    %v880 = vsel %vm59, %v878, %v834
    %v881 = vsel %vm59, %v879, %v865
    %v882 = vsel %vm140, %v880, %v871
    %v883 = vsel %vm140, %v881, %v875
    %v884 = vsel %vm117, %v882, %v871
    %v885 = vsel %vm117, %v883, %v875
    %v888 = vrot.slane %v884, 1
    %v889 = vrot.slane %v885, 1
    %890 = vrot.lane.b32.xlu0 %v888, 8
    %v891 = vpop.permute.xlu0 %890
    %892 = vrot.lane.b32.xlu0 %v889, 8
    %v893 = vpop.permute.xlu0 %892
    %v896 = vrot.slane %v884, 2
    %v897 = vrot.slane %v885, 2
    %898 = vrot.lane.b32.xlu0 %v896, 16
    %v899 = vpop.permute.xlu0 %898
    %900 = vrot.lane.b32.xlu0 %v897, 16
    %v901 = vpop.permute.xlu0 %900
    %v904 = vrot.slane %v884, 3
    %v905 = vrot.slane %v885, 3
    %906 = vrot.lane.b32.xlu0 %v904, 24
    %v907 = vpop.permute.xlu0 %906
    %908 = vrot.lane.b32.xlu0 %v905, 24
    %v909 = vpop.permute.xlu0 %908
    %v912 = vrot.slane %v884, 4
    %v913 = vrot.slane %v885, 4
    %914 = vrot.lane.b32.xlu0 %v912, 32
    %v915 = vpop.permute.xlu0 %914
    %916 = vrot.lane.b32.xlu0 %v913, 32
    %v917 = vpop.permute.xlu0 %916
    %v920 = vsel %vm191, %v884, %v891
    %v921 = vsel %vm191, %v885, %v893
    %v922 = vsel %vm201, %v920, %v899
    %v923 = vsel %vm201, %v921, %v901
    %v924 = vsel %vm423, %v922, %v907
    %v925 = vsel %vm423, %v923, %v909
    %v926 = vsel %vm428, %v924, %v915
    %v927 = vsel %vm428, %v925, %v917
    %v928 = vld [vmem:[#allocation2 + $0x38] sm:$0xf]
    %v929 = vld [vmem:[#allocation2 + $0x3c] sm:$0xf]
    %v930 = vld [vmem:[#allocation2 + $0x40] sm:$0xf]
    %v931 = vld [vmem:[#allocation2 + $0x44] sm:$0xf]
    %v932 = vld [vmem:[#allocation2 + $0x48] sm:$0xf]
    %v936 = vunpack.c.l.s4 1966171168
    %v937 = vunpack.c.0.s8 %v936
    %v938 = vlaneseq
    %v939 = vshrl.u32 %v938, 7
    %v940 = vsub.s32 %v937, %v939
    %v941 = vrot.slane %v926, %v940
    %v942 = vcombine.high %v941, %v941
    %v944 = vunpack.c.l.s4 1966171168
    %v945 = vunpack.c.0.s8 %v944
    %v946 = vlaneseq
    %v947 = vshrl.u32 %v946, 7
    %v948 = vsub.s32 %v945, %v947
    %v949 = vrot.slane %v941, %v948
    %v951 = vunpack.c.l.s4 1966171168
    %v952 = vunpack.c.0.s8 %v951
    %v953 = vlaneseq
    %v954 = vshrl.u32 %v953, 7
    %v955 = vsub.s32 %v952, %v954
    %v956 = vrot.slane %v942, %v955
    %v957 = vcombine.high %v949, %v949
    %v959 = vunpack.c.l.s4 1966171168
    %v960 = vunpack.c.0.s8 %v959
    %v961 = vlaneseq
    %v962 = vshrl.u32 %v961, 7
    %v963 = vsub.s32 %v960, %v962
    %v964 = vrot.slane %v927, %v963
    %v965 = vcombine.high %v964, %v964
    %v967 = vunpack.c.l.s4 1966171168
    %v968 = vunpack.c.0.s8 %v967
    %v969 = vlaneseq
    %v970 = vshrl.u32 %v969, 7
    %v971 = vsub.s32 %v968, %v970
    %v972 = vrot.slane %v964, %v971
    %v974 = vunpack.c.l.s4 1966171168
    %v975 = vunpack.c.0.s8 %v974
    %v976 = vlaneseq
    %v977 = vshrl.u32 %v976, 7
    %v978 = vsub.s32 %v975, %v977
    %v979 = vrot.slane %v965, %v978
    %v980 = vcombine.high %v972, %v972
    %v981 = vcombine.low %v949, %v956
    %v982 = vcombine.low %v957, %v972
    %v983 = vcombine.low %v979, %v980
    %v985 = vunpack.c.l.s4 1966171168
    %v986 = vunpack.c.0.s8 %v985
    %v987 = vlaneseq
    %v988 = vshrl.u32 %v987, 7
    %v989 = vsub.s32 %v986, %v988
    %v990 = vrot.slane %v981, %v989
    %v992 = vunpack.c.l.s4 1966171168
    %v993 = vunpack.c.0.s8 %v992
    %v994 = vlaneseq
    %v995 = vshrl.u32 %v994, 7
    %v996 = vsub.s32 %v993, %v995
    %v997 = vrot.slane %v982, %v996
    %v999 = vunpack.c.l.s4 1966171168
    %v1000 = vunpack.c.0.s8 %v999
    %v1001 = vlaneseq
    %v1002 = vshrl.u32 %v1001, 7
    %v1003 = vsub.s32 %v1000, %v1002
    %v1004 = vrot.slane %v983, %v1003
    %v1005 = vcombine.low %v990, %v997
    %v1007 = vunpack.c.l.s4 1966171168
    %v1008 = vunpack.c.0.s8 %v1007
    %v1009 = vlaneseq
    %v1010 = vshrl.u32 %v1009, 7
    %v1011 = vsub.s32 %v1008, %v1010
    %v1012 = vrot.slane %v1005, %v1011
    %v1014 = vunpack.c.l.s4 1966171168
    %v1015 = vunpack.c.0.s8 %v1014
    %v1016 = vlaneseq
    %v1017 = vshrl.u32 %v1016, 7
    %v1018 = vsub.s32 %v1015, %v1017
    %v1019 = vrot.slane %v1004, %v1018
    %v1020 = vcombine.low %v1012, %v1019
    %v1022 = vpack.c.bf16 %v1020, %v1020
    %v1023 = vlaneseq
    %v1024 = vshrl.u32 %v1023, 7
    %v1025 = vsub.s32 0, %v1024
    %v1026 = vrot.slane %v791, %v1025
    %v1032 = vunpack.c.l.b16 %v928
    %v1033 = vunpack.c.l.b16 %v929
    %v1034 = vunpack.c.l.b16 %v930
    %v1035 = vunpack.c.l.b16 %v931
    %v1036 = vunpack.c.l.b16 %v932
    %v1037 = vpack.c.b16 %v1033, %v1032
    %v1038 = vpack.c.b16 %v1035, %v1034
    %v1039 = vpack.c.b16 %v1036, %v1036
    %v1043 = vsel %vm459, %v1022, 0
    %v1046 = vsel %vm163, %v1039, 0
    %1048 = vmatprep.subr.bf16.mxu0 0
    %1049 = vmatpush1.bf16.msra.mxu0 %v1037
    %1050 = vmatprep.subr.bf16.mxu0 0
    %1051 = vmatpush1.bf16.msra.mxu0 %v1038
    %1052 = vmatprep.subr.bf16.mxu0 0
    %1053 = vmatpush1.bf16.msra.mxu0 %v1046
    %1054 = vmatprep.subr.bf16.mxu0 0
    %1055 = vmatpush1.bf16.msra.mxu0 0
    %1056 = vmatprep.subr.bf16.mxu0 0
    %1057 = vmatpush1.bf16.msra.mxu0 0
    %1058 = vmatprep.subr.bf16.mxu0 0
    %1059 = vmatpush1.bf16.msra.mxu0 0
    %1060 = vmatprep.subr.bf16.mxu0 0
    %1061 = vmatpush1.bf16.msra.mxu0 0
    %1062 = vmatprep.subr.bf16.mxu0 0
    %1063 = vmatpush1.bf16.msra.mxu0 0
    %1064 = vmatprep.subr.bf16.mxu0 0
    %1065 = vmatpush1.bf16.msra.mxu0 0
    %1066 = vmatprep.subr.bf16.mxu0 0
    %1067 = vmatpush1.bf16.msra.mxu0 0
    %1068 = vmatprep.subr.bf16.mxu0 0
    %1069 = vmatpush1.bf16.msra.mxu0 0
    %1070 = vmatprep.subr.bf16.mxu0 0
    %1071 = vmatpush1.bf16.msra.mxu0 0
    %1072 = vmatprep.subr.bf16.mxu0 0
    %1073 = vmatpush1.bf16.msra.mxu0 0
    %1074 = vmatprep.subr.bf16.mxu0 0
    %1075 = vmatpush1.bf16.msra.mxu0 0
    %1076 = vmatprep.subr.bf16.mxu0 0
    %1077 = vmatpush1.bf16.msra.mxu0 0
    %1078 = vmatprep.subr.bf16.mxu0 0
    %1079 = vmatpush1.bf16.msra.mxu0 0
    %1080 = vmatprep.mubr.bf16.mxu0 0
    %1081 = vmatmul.mubr.bf16.gmra.mrb[0].mxu0 %v1043
    %v1082 = vpop.f32.mrb[0].mxu0
    %v1083 = vadd.f32 %v1026, %v1082
    %v1084 = vpop.f32.mrb[0].mxu0
    %v1085 = vpop.f32.mrb[0].mxu0
    %v1086 = vpop.f32.mrb[0].mxu0
    %1087 = vdwg.mxu0
    %v1088 = vmax.f32 %v1083, 0.0
    %v1090 = vcombine.high %v1088, %v1088
    %v1092 = vunpack.c.l.s4 1966171168
    %v1093 = vunpack.c.0.s8 %v1092
    %v1094 = vlaneseq
    %v1095 = vshrl.u32 %v1094, 7
    %v1096 = vsub.s32 %v1093, %v1095
    %v1097 = vrot.slane %v1088, %v1096
    %v1099 = vunpack.c.l.s4 1966171168
    %v1100 = vunpack.c.0.s8 %v1099
    %v1101 = vlaneseq
    %v1102 = vshrl.u32 %v1101, 7
    %v1103 = vsub.s32 %v1100, %v1102
    %v1104 = vrot.slane %v1090, %v1103
    %v1105 = vcombine.high %v1097, %v1097
    %v1106 = vcombine.high %v1104, %v1104
    %v1108 = vunpack.c.l.s4 1966171168
    %v1109 = vunpack.c.0.s8 %v1108
    %v1110 = vlaneseq
    %v1111 = vshrl.u32 %v1110, 7
    %v1112 = vsub.s32 %v1109, %v1111
    %v1113 = vrot.slane %v1097, %v1112
    %v1115 = vunpack.c.l.s4 1966171168
    %v1116 = vunpack.c.0.s8 %v1115
    %v1117 = vlaneseq
    %v1118 = vshrl.u32 %v1117, 7
    %v1119 = vsub.s32 %v1116, %v1118
    %v1120 = vrot.slane %v1104, %v1119
    %v1122 = vunpack.c.l.s4 1966171168
    %v1123 = vunpack.c.0.s8 %v1122
    %v1124 = vlaneseq
    %v1125 = vshrl.u32 %v1124, 7
    %v1126 = vsub.s32 %v1123, %v1125
    %v1127 = vrot.slane %v1105, %v1126
    %v1129 = vunpack.c.l.s4 1966171168
    %v1130 = vunpack.c.0.s8 %v1129
    %v1131 = vlaneseq
    %v1132 = vshrl.u32 %v1131, 7
    %v1133 = vsub.s32 %v1130, %v1132
    %v1134 = vrot.slane %v1106, %v1133
    %v1135 = vcombine.high %v1113, %v1113
    %v1136 = vcombine.high %v1127, %v1127
    %v1139 = vlaneseq
    %v1140 = vshrl.u32 %v1139, 7
    %v1141 = vsub.s32 0, %v1140
    %v1142 = vrot.slane %v1113, %v1141
    %v1143 = vlaneseq
    %v1144 = vshrl.u32 %v1143, 7
    %v1145 = vsub.s32 0, %v1144
    %v1146 = vrot.slane %v1136, %v1145
    %v1149 = vcombine.low %v1113, %v1127
    %v1151 = vunpack.c.l.s4 1966171168
    %v1152 = vunpack.c.0.s8 %v1151
    %v1153 = vlaneseq
    %v1154 = vshrl.u32 %v1153, 7
    %v1155 = vsub.s32 %v1152, %v1154
    %v1156 = vrot.slane %v1149, %v1155
    %v1158 = vunpack.c.l.s4 1966171168
    %v1159 = vunpack.c.0.s8 %v1158
    %v1160 = vlaneseq
    %v1161 = vshrl.u32 %v1160, 7
    %v1162 = vsub.s32 %v1159, %v1161
    %v1163 = vrot.slane %v1135, %v1162
    %v1164 = vcombine.low %v1156, %v1156
    %v1166 = vunpack.c.l.s4 1966171168
    %v1167 = vunpack.c.0.s8 %v1166
    %v1168 = vlaneseq
    %v1169 = vshrl.u32 %v1168, 7
    %v1170 = vsub.s32 %v1167, %v1169
    %v1171 = vrot.slane %v1164, %v1170
    %v1173 = vunpack.c.l.s4 1966171168
    %v1174 = vunpack.c.0.s8 %v1173
    %v1175 = vlaneseq
    %v1176 = vshrl.u32 %v1175, 7
    %v1177 = vsub.s32 %v1174, %v1176
    %v1178 = vrot.slane %v1163, %v1177
    %v1179 = vcombine.low %v1171, %v1178
    %v1180 = vcombine.low %v1136, %v1120
    %v1182 = vunpack.c.l.s4 1966171168
    %v1183 = vunpack.c.0.s8 %v1182
    %v1184 = vlaneseq
    %v1185 = vshrl.u32 %v1184, 7
    %v1186 = vsub.s32 %v1183, %v1185
    %v1187 = vrot.slane %v1180, %v1186
    %v1189 = vunpack.c.l.s4 1966171168
    %v1190 = vunpack.c.0.s8 %v1189
    %v1191 = vlaneseq
    %v1192 = vshrl.u32 %v1191, 7
    %v1193 = vsub.s32 %v1190, %v1192
    %v1194 = vrot.slane %v1134, %v1193
    %v1195 = vcombine.low %v1187, %v1187
    %v1197 = vunpack.c.l.s4 1966171168
    %v1198 = vunpack.c.0.s8 %v1197
    %v1199 = vlaneseq
    %v1200 = vshrl.u32 %v1199, 7
    %v1201 = vsub.s32 %v1198, %v1200
    %v1202 = vrot.slane %v1195, %v1201
    %v1204 = vunpack.c.l.s4 1966171168
    %v1205 = vunpack.c.0.s8 %v1204
    %v1206 = vlaneseq
    %v1207 = vshrl.u32 %v1206, 7
    %v1208 = vsub.s32 %v1205, %v1207
    %v1209 = vrot.slane %v1194, %v1208
    %v1210 = vcombine.low %v1202, %v1209
    %v1213 = vlaneseq
    %v1214 = vshrl.u32 %v1213, 7
    %v1215 = vsub.s32 0, %v1214
    %v1216 = vrot.slane %v1135, %v1215
    %v1217 = vlaneseq
    %v1218 = vshrl.u32 %v1217, 7
    %v1219 = vsub.s32 0, %v1218
    %v1220 = vrot.slane %v1134, %v1219
    %v1223 = vsel %vm80, %v1113, %v1142
    %v1224 = vsel %vm80, %v1136, %v1146
    %v1225 = vsel %vm59, %v1223, %v1179
    %v1226 = vsel %vm59, %v1224, %v1210
    %v1227 = vsel %vm140, %v1225, %v1216
    %v1228 = vsel %vm140, %v1226, %v1220
    %v1229 = vsel %vm117, %v1227, %v1216
    %v1230 = vsel %vm117, %v1228, %v1220
    %v1233 = vrot.slane %v1229, 1
    %v1234 = vrot.slane %v1230, 1
    %1235 = vrot.lane.b32.xlu0 %v1233, 16
    %v1236 = vpop.permute.xlu0 %1235
    %1237 = vrot.lane.b32.xlu0 %v1234, 16
    %v1238 = vpop.permute.xlu0 %1237
    %v1241 = vrot.slane %v1229, 2
    %v1242 = vrot.slane %v1230, 2
    %1243 = vrot.lane.b32.xlu0 %v1241, 32
    %v1244 = vpop.permute.xlu0 %1243
    %1245 = vrot.lane.b32.xlu0 %v1242, 32
    %v1246 = vpop.permute.xlu0 %1245
    %v1249 = vrot.slane %v1229, 3
    %v1250 = vrot.slane %v1230, 3
    %1251 = vrot.lane.b32.xlu0 %v1249, 48
    %v1252 = vpop.permute.xlu0 %1251
    %1253 = vrot.lane.b32.xlu0 %v1250, 48
    %v1254 = vpop.permute.xlu0 %1253
    %v1257 = vrot.slane %v1229, 4
    %v1258 = vrot.slane %v1230, 4
    %1259 = vrot.lane.b32.xlu0 %v1257, 64
    %v1260 = vpop.permute.xlu0 %1259
    %1261 = vrot.lane.b32.xlu0 %v1258, 64
    %v1262 = vpop.permute.xlu0 %1261
    %v1265 = vsel %vm201, %v1229, %v1236
    %v1266 = vsel %vm201, %v1230, %v1238
    %v1267 = vsel %vm428, %v1265, %v1244
    %v1268 = vsel %vm428, %v1266, %v1246
    %vm1269 = vcmask 392192
    %v1270 = vsel %vm1269, %v1267, %v1252
    %v1271 = vsel %vm1269, %v1268, %v1254
    %vm1272 = vcmask 523264
    %v1273 = vsel %vm1272, %v1270, %v1260
    %v1274 = vsel %vm1272, %v1271, %v1262
    %v1275 = vld [vmem:[#allocation2 + $0x50] sm:$0xf]
    %v1276 = vld [vmem:[#allocation2 + $0x54] sm:$0xf]
    %v1277 = vld [vmem:[#allocation2 + $0x58] sm:$0xf]
    %v1278 = vld [vmem:[#allocation2 + $0x5c] sm:$0xf]
    %v1279 = vld [vmem:[#allocation2 + $0x60] sm:$0xf]
    %v1280 = vld [vmem:[#allocation2 + $0x64] sm:$0xf]
    %v1281 = vld [vmem:[#allocation2 + $0x68] sm:$0xf]
    %v1282 = vld [vmem:[#allocation2 + $0x6c] sm:$0xf]
    %v1283 = vld [vmem:[#allocation2 + $0x70] sm:$0xf]
    %v1284 = vld [vmem:[#allocation2 + $0x74] sm:$0xf]
    %v1288 = vunpack.c.l.s4 1966171168
    %v1289 = vunpack.c.0.s8 %v1288
    %v1290 = vlaneseq
    %v1291 = vshrl.u32 %v1290, 7
    %v1292 = vsub.s32 %v1289, %v1291
    %v1293 = vrot.slane %v1273, %v1292
    %v1294 = vcombine.high %v1293, %v1293
    %v1296 = vunpack.c.l.s4 1966171168
    %v1297 = vunpack.c.0.s8 %v1296
    %v1298 = vlaneseq
    %v1299 = vshrl.u32 %v1298, 7
    %v1300 = vsub.s32 %v1297, %v1299
    %v1301 = vrot.slane %v1293, %v1300
    %v1303 = vunpack.c.l.s4 1966171168
    %v1304 = vunpack.c.0.s8 %v1303
    %v1305 = vlaneseq
    %v1306 = vshrl.u32 %v1305, 7
    %v1307 = vsub.s32 %v1304, %v1306
    %v1308 = vrot.slane %v1294, %v1307
    %v1309 = vcombine.high %v1301, %v1301
    %v1311 = vunpack.c.l.s4 1966171168
    %v1312 = vunpack.c.0.s8 %v1311
    %v1313 = vlaneseq
    %v1314 = vshrl.u32 %v1313, 7
    %v1315 = vsub.s32 %v1312, %v1314
    %v1316 = vrot.slane %v1274, %v1315
    %v1317 = vcombine.high %v1316, %v1316
    %v1319 = vunpack.c.l.s4 1966171168
    %v1320 = vunpack.c.0.s8 %v1319
    %v1321 = vlaneseq
    %v1322 = vshrl.u32 %v1321, 7
    %v1323 = vsub.s32 %v1320, %v1322
    %v1324 = vrot.slane %v1316, %v1323
    %v1326 = vunpack.c.l.s4 1966171168
    %v1327 = vunpack.c.0.s8 %v1326
    %v1328 = vlaneseq
    %v1329 = vshrl.u32 %v1328, 7
    %v1330 = vsub.s32 %v1327, %v1329
    %v1331 = vrot.slane %v1317, %v1330
    %v1332 = vcombine.high %v1324, %v1324
    %v1333 = vcombine.low %v1301, %v1308
    %v1334 = vcombine.low %v1309, %v1324
    %v1335 = vcombine.low %v1331, %v1332
    %v1337 = vunpack.c.l.s4 1966171168
    %v1338 = vunpack.c.0.s8 %v1337
    %v1339 = vlaneseq
    %v1340 = vshrl.u32 %v1339, 7
    %v1341 = vsub.s32 %v1338, %v1340
    %v1342 = vrot.slane %v1333, %v1341
    %v1344 = vunpack.c.l.s4 1966171168
    %v1345 = vunpack.c.0.s8 %v1344
    %v1346 = vlaneseq
    %v1347 = vshrl.u32 %v1346, 7
    %v1348 = vsub.s32 %v1345, %v1347
    %v1349 = vrot.slane %v1334, %v1348
    %v1351 = vunpack.c.l.s4 1966171168
    %v1352 = vunpack.c.0.s8 %v1351
    %v1353 = vlaneseq
    %v1354 = vshrl.u32 %v1353, 7
    %v1355 = vsub.s32 %v1352, %v1354
    %v1356 = vrot.slane %v1335, %v1355
    %v1357 = vcombine.low %v1342, %v1349
    %v1359 = vunpack.c.l.s4 1966171168
    %v1360 = vunpack.c.0.s8 %v1359
    %v1361 = vlaneseq
    %v1362 = vshrl.u32 %v1361, 7
    %v1363 = vsub.s32 %v1360, %v1362
    %v1364 = vrot.slane %v1357, %v1363
    %v1366 = vunpack.c.l.s4 1966171168
    %v1367 = vunpack.c.0.s8 %v1366
    %v1368 = vlaneseq
    %v1369 = vshrl.u32 %v1368, 7
    %v1370 = vsub.s32 %v1367, %v1369
    %v1371 = vrot.slane %v1356, %v1370
    %v1372 = vcombine.low %v1364, %v1371
    %v1374 = vpack.c.bf16 %v1372, %v1372
    %v1375 = vlaneseq
    %v1376 = vshrl.u32 %v1375, 7
    %v1377 = vsub.s32 0, %v1376
    %v1378 = vrot.slane %v792, %v1377
    %v1389 = vunpack.c.l.b16 %v1275
    %v1390 = vunpack.c.l.b16 %v1276
    %v1391 = vunpack.c.l.b16 %v1277
    %v1392 = vunpack.c.l.b16 %v1278
    %v1393 = vunpack.c.l.b16 %v1279
    %v1394 = vunpack.c.l.b16 %v1280
    %v1395 = vunpack.c.l.b16 %v1281
    %v1396 = vunpack.c.l.b16 %v1282
    %v1397 = vunpack.c.l.b16 %v1283
    %v1398 = vunpack.c.l.b16 %v1284
    %v1399 = vpack.c.b16 %v1390, %v1389
    %v1400 = vpack.c.b16 %v1392, %v1391
    %v1401 = vpack.c.b16 %v1394, %v1393
    %v1402 = vpack.c.b16 %v1396, %v1395
    %v1403 = vpack.c.b16 %v1398, %v1397
    %vm1409 = vcmask 654336
    %v1411 = vsel %vm1409, %v1374, 0
    %1413 = vmatprep.subr.bf16.mxu0 0
    %1414 = vmatpush1.bf16.msra.mxu0 %v1399
    %1415 = vmatprep.subr.bf16.mxu0 0
    %1416 = vmatpush1.bf16.msra.mxu0 %v1400
    %1417 = vmatprep.subr.bf16.mxu0 0
    %1418 = vmatpush1.bf16.msra.mxu0 %v1401
    %1419 = vmatprep.subr.bf16.mxu0 0
    %1420 = vmatpush1.bf16.msra.mxu0 %v1402
    %1421 = vmatprep.subr.bf16.mxu0 0
    %1422 = vmatpush1.bf16.msra.mxu0 %v1403
    %1423 = vmatprep.subr.bf16.mxu0 0
    %1424 = vmatpush1.bf16.msra.mxu0 0
    %1425 = vmatprep.subr.bf16.mxu0 0
    %1426 = vmatpush1.bf16.msra.mxu0 0
    %1427 = vmatprep.subr.bf16.mxu0 0
    %1428 = vmatpush1.bf16.msra.mxu0 0
    %1429 = vmatprep.subr.bf16.mxu0 0
    %1430 = vmatpush1.bf16.msra.mxu0 0
    %1431 = vmatprep.subr.bf16.mxu0 0
    %1432 = vmatpush1.bf16.msra.mxu0 0
    %1433 = vmatprep.subr.bf16.mxu0 0
    %1434 = vmatpush1.bf16.msra.mxu0 0
    %1435 = vmatprep.subr.bf16.mxu0 0
    %1436 = vmatpush1.bf16.msra.mxu0 0
    %1437 = vmatprep.subr.bf16.mxu0 0
    %1438 = vmatpush1.bf16.msra.mxu0 0
    %1439 = vmatprep.subr.bf16.mxu0 0
    %1440 = vmatpush1.bf16.msra.mxu0 0
    %1441 = vmatprep.subr.bf16.mxu0 0
    %1442 = vmatpush1.bf16.msra.mxu0 0
    %1443 = vmatprep.subr.bf16.mxu0 0
    %1444 = vmatpush1.bf16.msra.mxu0 0
    %1445 = vmatprep.mubr.bf16.mxu0 0
    %1446 = vmatmul.mubr.bf16.gmra.mrb[0].mxu0 %v1411
    %v1447 = vpop.f32.mrb[0].mxu0
    %v1448 = vadd.f32 %v1378, %v1447
    %v1449 = vpop.f32.mrb[0].mxu0
    %v1450 = vpop.f32.mrb[0].mxu0
    %v1451 = vpop.f32.mrb[0].mxu0
    %1452 = vdwg.mxu0
    %v1453 = vld [vmem:[#allocation2 + $0x78] sm:$0xf]
    %v1454 = vlaneseq
    %v1455 = vshrl.u32 %v1454, 7
    %v1456 = vsub.s32 0, %v1455
    %v1457 = vrot.slane %v793, %v1456
    %v1459 = vsel %vm163, %v1453, 0
    %1461 = vmatprep.subr.bf16.mxu0 0
    %1462 = vmatpush1.bf16.msra.mxu0 %v1459
    %1463 = vmatprep.subr.bf16.mxu0 0
    %1464 = vmatpush1.bf16.msra.mxu0 0
    %1465 = vmatprep.subr.bf16.mxu0 0
    %1466 = vmatpush1.bf16.msra.mxu0 0
    %1467 = vmatprep.subr.bf16.mxu0 0
    %1468 = vmatpush1.bf16.msra.mxu0 0
    %1469 = vmatprep.subr.bf16.mxu0 0
    %1470 = vmatpush1.bf16.msra.mxu0 0
    %1471 = vmatprep.subr.bf16.mxu0 0
    %1472 = vmatpush1.bf16.msra.mxu0 0
    %1473 = vmatprep.subr.bf16.mxu0 0
    %1474 = vmatpush1.bf16.msra.mxu0 0
    %1475 = vmatprep.subr.bf16.mxu0 0
    %1476 = vmatpush1.bf16.msra.mxu0 0
    %1477 = vmatprep.subr.bf16.mxu0 0
    %1478 = vmatpush1.bf16.msra.mxu0 0
    %1479 = vmatprep.subr.bf16.mxu0 0
    %1480 = vmatpush1.bf16.msra.mxu0 0
    %1481 = vmatprep.subr.bf16.mxu0 0
    %1482 = vmatpush1.bf16.msra.mxu0 0
    %1483 = vmatprep.subr.bf16.mxu0 0
    %1484 = vmatpush1.bf16.msra.mxu0 0
    %1485 = vmatprep.subr.bf16.mxu0 0
    %1486 = vmatpush1.bf16.msra.mxu0 0
    %1487 = vmatprep.subr.bf16.mxu0 0
    %1488 = vmatpush1.bf16.msra.mxu0 0
    %1489 = vmatprep.subr.bf16.mxu0 0
    %1490 = vmatpush1.bf16.msra.mxu0 0
    %1491 = vmatprep.subr.bf16.mxu0 0
    %1492 = vmatpush1.bf16.msra.mxu0 0
    %1493 = vmatprep.mubr.bf16.mxu0 0
    %1494 = vmatmul.mubr.bf16.gmra.mrb[0].mxu0 %v690
    %v1495 = vpop.f32.mrb[0].mxu0
    %v1496 = vadd.f32 %v1457, %v1495
    %v1497 = vpop.f32.mrb[0].mxu0
    %v1498 = vpop.f32.mrb[0].mxu0
    %v1499 = vpop.f32.mrb[0].mxu0
    %1500 = vdwg.mxu0
    %v1501 = vadd.f32 %v1448, %v1496
    %v1502 = vmax.f32 %v1501, 0.0
    %v1503 = vmax.f32 %v1502, 1e-06
    %v1504 = vld [vmem:[#allocation5 + $0x28] sm:$0x3f]
    %v1505 = vmul.f32 %v1503, %v1503
    %v1506 = vmul.f32 %v1505, %v1503
    %vm1507 = vcmask 48128
    %v1509 = vsel %vm1507, %v1504, 0
    %v1512 = vsel %vm117, %v1506, 0
    %1514 = vmatprep.subr.mxu0 0.0
    %1515 = vmatpush1.msra.mxu0 %v1512
    %1516 = vmatprep.subr.mxu0 0.0
    %1517 = vmatpush1.msra.mxu0 0.0
    %1518 = vmatprep.subr.mxu0 0.0
    %1519 = vmatpush1.msra.mxu0 0.0
    %1520 = vmatprep.subr.mxu0 0.0
    %1521 = vmatpush1.msra.mxu0 0.0
    %1522 = vmatprep.subr.mxu0 0.0
    %1523 = vmatpush1.msra.mxu0 0.0
    %1524 = vmatprep.subr.mxu0 0.0
    %1525 = vmatpush1.msra.mxu0 0.0
    %1526 = vmatprep.subr.mxu0 0.0
    %1527 = vmatpush1.msra.mxu0 0.0
    %1528 = vmatprep.subr.mxu0 0.0
    %1529 = vmatpush1.msra.mxu0 0.0
    %1530 = vmatprep.subr.mxu0 0.0
    %1531 = vmatpush1.msra.mxu0 0.0
    %1532 = vmatprep.subr.mxu0 0.0
    %1533 = vmatpush1.msra.mxu0 0.0
    %1534 = vmatprep.subr.mxu0 0.0
    %1535 = vmatpush1.msra.mxu0 0.0
    %1536 = vmatprep.subr.mxu0 0.0
    %1537 = vmatpush1.msra.mxu0 0.0
    %1538 = vmatprep.subr.mxu0 0.0
    %1539 = vmatpush1.msra.mxu0 0.0
    %1540 = vmatprep.subr.mxu0 0.0
    %1541 = vmatpush1.msra.mxu0 0.0
    %1542 = vmatprep.subr.mxu0 0.0
    %1543 = vmatpush1.msra.mxu0 0.0
    %1544 = vmatprep.subr.mxu0 0.0
    %1545 = vmatpush1.msra.mxu0 0.0
    %1546 = vmatprep.subr.mxu0 0.0
    %1547 = vmatpush1.msra.mxu0 0.0
    %1548 = vmatprep.subr.mxu0 0.0
    %1549 = vmatpush1.msra.mxu0 0.0
    %1550 = vmatprep.subr.mxu0 0.0
    %1551 = vmatpush1.msra.mxu0 0.0
    %1552 = vmatprep.subr.mxu0 0.0
    %1553 = vmatpush1.msra.mxu0 0.0
    %1554 = vmatprep.subr.mxu0 0.0
    %1555 = vmatpush1.msra.mxu0 0.0
    %1556 = vmatprep.subr.mxu0 0.0
    %1557 = vmatpush1.msra.mxu0 0.0
    %1558 = vmatprep.subr.mxu0 0.0
    %1559 = vmatpush1.msra.mxu0 0.0
    %1560 = vmatprep.subr.mxu0 0.0
    %1561 = vmatpush1.msra.mxu0 0.0
    %1562 = vmatprep.subr.mxu0 0.0
    %1563 = vmatpush1.msra.mxu0 0.0
    %1564 = vmatprep.subr.mxu0 0.0
    %1565 = vmatpush1.msra.mxu0 0.0
    %1566 = vmatprep.subr.mxu0 0.0
    %1567 = vmatpush1.msra.mxu0 0.0
    %1568 = vmatprep.subr.mxu0 0.0
    %1569 = vmatpush1.msra.mxu0 0.0
    %1570 = vmatprep.subr.mxu0 0.0
    %1571 = vmatpush1.msra.mxu0 0.0
    %1572 = vmatprep.subr.mxu0 0.0
    %1573 = vmatpush1.msra.mxu0 0.0
    %1574 = vmatprep.subr.mxu0 0.0
    %1575 = vmatpush1.msra.mxu0 0.0
    %1576 = vmatprep.subr.mxu0 0.0
    %1577 = vmatpush1.msra.mxu0 0.0
    %1578 = vmatprep.mubr.f32.mxu0 0.0
    %1579 = vmatmul.mubr.f32.gmra.mrb[0].mxu0 %v1509
    %v1580 = vpop.f32.mrb[0].mxu0
    %v1581 = vadd.f32 0.0, %v1580
    %v1582 = vpop.f32.mrb[0].mxu0
    %1583 = vdwg.mxu0
    %v1584 = vlog2.pop %v1581
    %v1585 = vmul.f32 %v1584, 0.6931472
    %v1586 = vmul.f32 %v1585, 0.33333334
    %v1587 = vmul.f32 %v1586, 1.442695
    %v1588 = vpow.pop %v1587
    %v1589 = vpack.c.bf16 %v1588, %v1588
    %v1590 = vld [vmem:[#allocation2 + $0x80] sm:$0xf]
    %v1591 = vld [vmem:[#allocation2 + $0x84] sm:$0xf]
    %v1592 = vld [vmem:[#allocation5 + $0x20] sm:$0x1]
    %v1593 = vlaneseq
    %v1594 = vshrl.u32 %v1593, 7
    %v1595 = vsub.s32 0, %v1594
    %v1596 = vrot.slane %v1592, %v1595
    %v1599 = vunpack.c.l.b16 %v1590
    %v1600 = vunpack.c.l.b16 %v1591
    %v1601 = vpack.c.b16 %v1600, %v1599
    %v1604 = vsel %vm201, %v1589, 0
    %1606 = vmatprep.subr.bf16.mxu0 0
    %1607 = vmatpush1.bf16.msra.mxu0 %v1601
    %1608 = vmatprep.subr.bf16.mxu0 0
    %1609 = vmatpush1.bf16.msra.mxu0 0
    %1610 = vmatprep.subr.bf16.mxu0 0
    %1611 = vmatpush1.bf16.msra.mxu0 0
    %1612 = vmatprep.subr.bf16.mxu0 0
    %1613 = vmatpush1.bf16.msra.mxu0 0
    %1614 = vmatprep.subr.bf16.mxu0 0
    %1615 = vmatpush1.bf16.msra.mxu0 0
    %1616 = vmatprep.subr.bf16.mxu0 0
    %1617 = vmatpush1.bf16.msra.mxu0 0
    %1618 = vmatprep.subr.bf16.mxu0 0
    %1619 = vmatpush1.bf16.msra.mxu0 0
    %1620 = vmatprep.subr.bf16.mxu0 0
    %1621 = vmatpush1.bf16.msra.mxu0 0
    %1622 = vmatprep.subr.bf16.mxu0 0
    %1623 = vmatpush1.bf16.msra.mxu0 0
    %1624 = vmatprep.subr.bf16.mxu0 0
    %1625 = vmatpush1.bf16.msra.mxu0 0
    %1626 = vmatprep.subr.bf16.mxu0 0
    %1627 = vmatpush1.bf16.msra.mxu0 0
    %1628 = vmatprep.subr.bf16.mxu0 0
    %1629 = vmatpush1.bf16.msra.mxu0 0
    %1630 = vmatprep.subr.bf16.mxu0 0
    %1631 = vmatpush1.bf16.msra.mxu0 0
    %1632 = vmatprep.subr.bf16.mxu0 0
    %1633 = vmatpush1.bf16.msra.mxu0 0
    %1634 = vmatprep.subr.bf16.mxu0 0
    %1635 = vmatpush1.bf16.msra.mxu0 0
    %1636 = vmatprep.subr.bf16.mxu0 0
    %1637 = vmatpush1.bf16.msra.mxu0 0
    %1638 = vmatprep.mubr.bf16.mxu0 0
    %1639 = vmatmul.mubr.bf16.gmra.mrb[0].mxu0 %v1604
    %v1640 = vpop.f32.mrb[0].mxu0
    %v1641 = vadd.f32 %v1596, %v1640
    %v1642 = vpop.f32.mrb[0].mxu0
    %v1643 = vpop.f32.mrb[0].mxu0
    %v1644 = vpop.f32.mrb[0].mxu0
    %1645 = vdwg.mxu0
    %v1646 = vsub.f32 0.0, %v1641
    %v1647 = vmul.f32 %v1646, 1.442695
    %v1648 = vpow.pop %v1647
    %v1649 = vadd.f32 %v1648, 1.0
    %v1650 = vrcp.pop %v1649
    %v1651 = vmul.f32 %v1641, %v1650
    %v1652 = vmax.f32 %v740, %v1651
    %v1653 = vadd.f32 %v1588, %v1652
    %v1654 = vld [vmem:[#allocation5 + $0x30] sm:$0x3]
    %v1656 = vsel %vm1507, %v1654, 0
    %v1659 = vsel %vm117, %v1653, 0
    %1661 = vmatprep.subr.mxu0 0.0
    %1662 = vmatpush1.msra.mxu0 %v1659
    %1663 = vmatprep.subr.mxu0 0.0
    %1664 = vmatpush1.msra.mxu0 0.0
    %1665 = vmatprep.subr.mxu0 0.0
    %1666 = vmatpush1.msra.mxu0 0.0
    %1667 = vmatprep.subr.mxu0 0.0
    %1668 = vmatpush1.msra.mxu0 0.0
    %1669 = vmatprep.subr.mxu0 0.0
    %1670 = vmatpush1.msra.mxu0 0.0
    %1671 = vmatprep.subr.mxu0 0.0
    %1672 = vmatpush1.msra.mxu0 0.0
    %1673 = vmatprep.subr.mxu0 0.0
    %1674 = vmatpush1.msra.mxu0 0.0
    %1675 = vmatprep.subr.mxu0 0.0
    %1676 = vmatpush1.msra.mxu0 0.0
    %1677 = vmatprep.subr.mxu0 0.0
    %1678 = vmatpush1.msra.mxu0 0.0
    %1679 = vmatprep.subr.mxu0 0.0
    %1680 = vmatpush1.msra.mxu0 0.0
    %1681 = vmatprep.subr.mxu0 0.0
    %1682 = vmatpush1.msra.mxu0 0.0
    %1683 = vmatprep.subr.mxu0 0.0
    %1684 = vmatpush1.msra.mxu0 0.0
    %1685 = vmatprep.subr.mxu0 0.0
    %1686 = vmatpush1.msra.mxu0 0.0
    %1687 = vmatprep.subr.mxu0 0.0
    %1688 = vmatpush1.msra.mxu0 0.0
    %1689 = vmatprep.subr.mxu0 0.0
    %1690 = vmatpush1.msra.mxu0 0.0
    %1691 = vmatprep.subr.mxu0 0.0
    %1692 = vmatpush1.msra.mxu0 0.0
    %1693 = vmatprep.subr.mxu0 0.0
    %1694 = vmatpush1.msra.mxu0 0.0
    %1695 = vmatprep.subr.mxu0 0.0
    %1696 = vmatpush1.msra.mxu0 0.0
    %1697 = vmatprep.subr.mxu0 0.0
    %1698 = vmatpush1.msra.mxu0 0.0
    %1699 = vmatprep.subr.mxu0 0.0
    %1700 = vmatpush1.msra.mxu0 0.0
    %1701 = vmatprep.subr.mxu0 0.0
    %1702 = vmatpush1.msra.mxu0 0.0
    %1703 = vmatprep.subr.mxu0 0.0
    %1704 = vmatpush1.msra.mxu0 0.0
    %1705 = vmatprep.subr.mxu0 0.0
    %1706 = vmatpush1.msra.mxu0 0.0
    %1707 = vmatprep.subr.mxu0 0.0
    %1708 = vmatpush1.msra.mxu0 0.0
    %1709 = vmatprep.subr.mxu0 0.0
    %1710 = vmatpush1.msra.mxu0 0.0
    %1711 = vmatprep.subr.mxu0 0.0
    %1712 = vmatpush1.msra.mxu0 0.0
    %1713 = vmatprep.subr.mxu0 0.0
    %1714 = vmatpush1.msra.mxu0 0.0
    %1715 = vmatprep.subr.mxu0 0.0
    %1716 = vmatpush1.msra.mxu0 0.0
    %1717 = vmatprep.subr.mxu0 0.0
    %1718 = vmatpush1.msra.mxu0 0.0
    %1719 = vmatprep.subr.mxu0 0.0
    %1720 = vmatpush1.msra.mxu0 0.0
    %1721 = vmatprep.subr.mxu0 0.0
    %1722 = vmatpush1.msra.mxu0 0.0
    %1723 = vmatprep.subr.mxu0 0.0
    %1724 = vmatpush1.msra.mxu0 0.0
    %1725 = vmatprep.mubr.f32.mxu0 0.0
    %1726 = vmatmul.mubr.f32.gmra.mrb[0].mxu0 %v1656
    %v1727 = vpop.f32.mrb[0].mxu0
    %v1728 = vadd.f32 0.0, %v1727
    %v1729 = vpop.f32.mrb[0].mxu0
    %1730 = vdwg.mxu0
    %vm1731 = vcmask 123904
    %1732 = vst.msk [vmem:[#allocation7] sm:$0x3] %vm1731, %v1728
    // Predicated region
    $region22: #{forward.1} parent=1 // pred_check
      _
    $region23: #{forward.1} parent=1 // pred_check_branch
      %1734 = sbr.rel (0) target = $region25
    $region24: #{forward.1} parent=1 // pred_region
      %s1736 = ssub.s32 32, 32
      %1737 = vsyncadd [#allocation4], %s1736
      %s1739 = sshll.u32 [#allocation7], 4
      %s1740 = int_to_ptr.vmem [resolvable:$true] %s1739
      %1742 = dma.vmem_to_hbm [thread:$0]  %s1740, 32, %s3, [#allocation4]
    $region25: #{forward.1} parent=1 // pred_fallthru
      _
    // Predicated region
    $region26: #{forward.1} parent=1 // pred_check
      _
    $region27: #{forward.1} parent=1 // pred_check_branch
      %1744 = sbr.rel (0) target = $region29
    $region28: #{forward.1} parent=1 // pred_region
      %1745 = dma.done [#allocation4], 32
    $region29: #{forward.1} parent=1 // pred_fallthru
      _
    %1746 = vsyncpa [#allocation3], 1
    %1747 = vsyncpa [#allocation6], 1
    %1748 = vsyncpa [#allocation4], 1

</llo_original>
